<compile_context>
chip_gen: v7x
topology: tpu7x:2x2x1
jax: 0.10.0
libtpu: 0.0.40
codegen_flags: <defaults>
</compile_context>

<pallas_src>
import functools

import jax
import jax.numpy as jnp
from jax.experimental import pallas as pl
from jax.experimental.pallas import tpu as pltpu

# Logical (PyTorch) dims.
D_IN = 344
D_H1 = 344
D_H2 = 300
D_RES = 236
D_H3 = 512
D_OUT = 236

# Lane-padded dims (multiples of 128).  Zero padding is mathematically inert:
# padded weight rows/cols and bias entries are 0, and ReLU(0) = 0.
PD_IN = 384
PD_H1 = 384
PD_H2 = 384
PD_RES = 256
PD_H3 = 512
PD_OUT = 256


def _round_up(n, m):
    return ((n + m - 1) // m) * m


def _simple_net_kernel(x_ref,
                       w1_ref, b1_ref,
                       w2_ref, b2_ref,
                       w3_ref, b3_ref,
                       w4a_ref, w4b_ref, b4_ref,
                       w5_ref, b5_ref,
                       o_ref):
    """Whole forward for one batch tile; all operands resident in VMEM.

    x arrives already cast to the weight dtype (bf16 or f32).  Every dot
    accumulates in f32 (preferred_element_type); biases stay f32.  ReLU runs
    after the cast to the weight dtype (bit-identical: max commutes with the
    monotone bf16 round), halving its VALU ops on bf16-capable chips.
    """
    cdt = w1_ref.dtype
    x = x_ref[...]

    # net: Linear -> ReLU -> Linear -> ReLU -> Linear (padded, full-width MXU tiles)
    h1 = (jnp.dot(x, w1_ref[...], preferred_element_type=jnp.float32)
          + b1_ref[...]).astype(cdt)
    h1 = jnp.maximum(h1, 0)
    h2 = (jnp.dot(h1, w2_ref[...], preferred_element_type=jnp.float32)
          + b2_ref[...]).astype(cdt)
    h2 = jnp.maximum(h2, 0)
    res = (jnp.dot(h2, w3_ref[...], preferred_element_type=jnp.float32)
           + b3_ref[...]).astype(cdt)

    # net2 on concat([res, x], axis=1) as a split matmul (no concat needed).
    h3 = (jnp.dot(res, w4a_ref[...], preferred_element_type=jnp.float32)
          + jnp.dot(x, w4b_ref[...], preferred_element_type=jnp.float32)
          + b4_ref[...]).astype(cdt)
    h3 = jnp.maximum(h3, 0)
    out = jnp.dot(h3, w5_ref[...], preferred_element_type=jnp.float32) + b5_ref[...]

    o_ref[...] = out.astype(o_ref.dtype)   # lane-dense (bt, 256) unmasked store


def _pad2(a, rows, cols):
    return jnp.pad(a, ((0, rows - a.shape[0]), (0, cols - a.shape[1])))


def prepare_params(params, dtype=jnp.bfloat16):
    """One-time glue: transpose to (in,out), split net2's first weight into the
    res/x halves, zero-pad every dim to a lane multiple, cast weights to `dtype`,
    and reshape biases to (1, out) f32.  Call once, reuse across forward calls."""
    (w1, b1), (w2, b2), (w3, b3), (w4, b4), (w5, b5) = params

    w1p = _pad2(w1.T, PD_IN, PD_H1).astype(dtype)
    w2p = _pad2(w2.T, PD_H1, PD_H2).astype(dtype)
    w3p = _pad2(w3.T, PD_H2, PD_RES).astype(dtype)
    w4t = w4.T                                               # (580, 512)
    w4a = _pad2(w4t[:D_RES], PD_RES, PD_H3).astype(dtype)    # res rows
    w4b = _pad2(w4t[D_RES:], PD_IN, PD_H3).astype(dtype)     # x rows
    w5p = _pad2(w5.T, PD_H3, PD_OUT).astype(dtype)

    def padb(b, n):
        return jnp.pad(b.astype(jnp.float32), (0, n - b.shape[0]))[None, :]

    return (w1p, padb(b1, PD_H1),
            w2p, padb(b2, PD_H2),
            w3p, padb(b3, PD_RES),
            w4a, w4b, padb(b4, PD_H3),
            w5p, padb(b5, PD_OUT))


@functools.partial(jax.jit, static_argnames=("batch_tile", "vmem_limit_bytes"))
def simple_net_forward(x, prepped, *, batch_tile=512,
                       vmem_limit_bytes=48 * 1024 * 1024):
    """x: (B, 344) float32.  prepped: output of prepare_params().  Returns (B, 236) f32.

    batch_tile=512 fits comfortably in VMEM on v5e/v6e (128 MiB) and v7x (64 MiB);
    v5e/v6e users chasing the last few % at very large B can raise batch_tile to
    1024-4096 together with vmem_limit_bytes.
    """
    B = x.shape[0]
    w_dtype = prepped[0].dtype

    # Balanced batch tiles: never pad up by a whole tile for a ragged batch.
    bt_cap = max(8, _round_up(int(batch_tile), 8))
    n_tiles = max(1, -(-B // bt_cap))                  # cdiv(B, bt_cap)
    bt = _round_up(-(-B // n_tiles), 8)                # round_up(cdiv(B, n_tiles), 8)
    B_pad = n_tiles * bt

    # Cast x to the weight dtype (bf16 fast path) BEFORE padding: halves the pad
    # copy and the per-step x DMA, and removes the in-kernel cast.
    x_pad = jnp.pad(x.astype(w_dtype), ((0, B_pad - B), (0, PD_IN - D_IN)))

    # Resident (constant index_map) full blocks: Pallas DMAs them once, not per step.
    full = lambda shape: pl.BlockSpec(shape, lambda i: (0, 0))

    grid_spec = pltpu.PrefetchScalarGridSpec(
        num_scalar_prefetch=0,
        grid=(n_tiles,),
        in_specs=[
            pl.BlockSpec((bt, PD_IN), lambda i: (i, 0)),        # x tile (pipelined)
            full((PD_IN, PD_H1)), full((1, PD_H1)),
            full((PD_H1, PD_H2)), full((1, PD_H2)),
            full((PD_H2, PD_RES)), full((1, PD_RES)),
            full((PD_RES, PD_H3)), full((PD_IN, PD_H3)), full((1, PD_H3)),
            full((PD_H3, PD_OUT)), full((1, PD_OUT)),
        ],
        out_specs=pl.BlockSpec((bt, PD_OUT), lambda i: (i, 0)),
    )

    # Advisory cost hint so XLA overlaps the surrounding pad/slice with the kernel.
    padded_macs = (PD_IN * PD_H1 + PD_H1 * PD_H2 + PD_H2 * PD_RES
                   + (PD_RES + PD_IN) * PD_H3 + PD_H3 * PD_OUT)        # 851_968
    weight_bytes = sum(p.size * p.dtype.itemsize for p in prepped)
    cost = pl.CostEstimate(
        flops=2 * B_pad * padded_macs,
        transcendentals=0,
        bytes_accessed=(weight_bytes
                        + x_pad.size * x_pad.dtype.itemsize
                        + B_pad * PD_OUT * 4))

    out_pad = pl.pallas_call(
        _simple_net_kernel,
        out_shape=jax.ShapeDtypeStruct((B_pad, PD_OUT), jnp.float32),
        grid_spec=grid_spec,
        cost_estimate=cost,
        compiler_params=pltpu.CompilerParams(
            dimension_semantics=("parallel",),       # batch tiles shard across TCs
            vmem_limit_bytes=vmem_limit_bytes),
    )(x_pad, *prepped)

    return out_pad[:B, :D_OUT]


def _init_linear(key, fan_in, fan_out):
    """Deterministic init matching torch.nn.Linear defaults: U(-1/sqrt(fan_in), +...)."""
    kw, kb = jax.random.split(key)
    bound = 1.0 / jnp.sqrt(jnp.float32(fan_in))
    w = jax.random.uniform(kw, (fan_out, fan_in), jnp.float32, -bound, bound)
    b = jax.random.uniform(kb, (fan_out,), jnp.float32, -bound, bound)
    return w, b


def init_params(key):
    keys = jax.random.split(key, 5)
    return [
        _init_linear(keys[0], D_IN, D_H1),            # net[0]
        _init_linear(keys[1], D_H1, D_H2),            # net[2]
        _init_linear(keys[2], D_H2, D_RES),           # net[4]
        _init_linear(keys[3], D_RES + D_IN, D_H3),    # net2[0]
        _init_linear(keys[4], D_H3, D_OUT),           # net2[2]
    ]


def _reference_forward(x, params):
    """Pure-JAX reference mirroring the PyTorch module exactly (dim=1 concat path)."""
    (w1, b1), (w2, b2), (w3, b3), (w4, b4), (w5, b5) = params
    h = jnp.maximum(x @ w1.T + b1, 0.0)
    h = jnp.maximum(h @ w2.T + b2, 0.0)
    res = h @ w3.T + b3
    concat = jnp.concatenate([res, x], axis=1)
    h2 = jnp.maximum(concat @ w4.T + b4, 0.0)
    return h2 @ w5.T + b5


if __name__ == "__main__":
    key = jax.random.PRNGKey(0)
    kp, kx = jax.random.split(key)
    params = init_params(kp)

    # Small batch consistent with the module's (B, 344) input.
    x = jax.random.normal(kx, (8, D_IN), jnp.float32)
    ref = _reference_forward(x, params)

    # f32 weights: strict check.
    prepped_f32 = prepare_params(params, dtype=jnp.float32)
    out_f32 = jax.block_until_ready(simple_net_forward(x, prepped_f32))
    assert out_f32.shape == (8, D_OUT)
    assert jnp.allclose(out_f32, ref, atol=1e-4, rtol=1e-4)

    # bf16 weights + bf16 x (MXU-native fast path): f32 accumulation, operand rounding only.
    prepped_bf16 = prepare_params(params, dtype=jnp.bfloat16)
    out_bf16 = jax.block_until_ready(simple_net_forward(x, prepped_bf16))
    assert out_bf16.shape == (8, D_OUT)
    assert jnp.allclose(out_bf16, ref, atol=2e-1, rtol=1e-1)

    # Ragged, multi-tile batch: exercises balanced-tile padding (B=200, tile=64 ->
    # 4 tiles of 56 rows, 224 padded rows) and a pipelined grid of >1 steps.
    x_big = jax.random.normal(jax.random.PRNGKey(1), (200, D_IN), jnp.float32)
    ref_big = _reference_forward(x_big, params)
    out_big = jax.block_until_ready(
        simple_net_forward(x_big, prepped_f32, batch_tile=64))
    assert out_big.shape == (200, D_OUT)
    assert jnp.allclose(out_big, ref_big, atol=1e-4, rtol=1e-4)

    print("KERNEL_OK")
</pallas_src>

<mosaic_0001>
module attributes {stable_mosaic.version = 11 : i64} {
  func.func @_simple_net_kernel(%arg0: i32, %arg1: memref<8x384xf32, #tpu.memory_space<vmem>>, %arg2: memref<384x384xf32, #tpu.memory_space<vmem>>, %arg3: memref<1x384xf32, #tpu.memory_space<vmem>>, %arg4: memref<384x384xf32, #tpu.memory_space<vmem>>, %arg5: memref<1x384xf32, #tpu.memory_space<vmem>>, %arg6: memref<384x256xf32, #tpu.memory_space<vmem>>, %arg7: memref<1x256xf32, #tpu.memory_space<vmem>>, %arg8: memref<256x512xf32, #tpu.memory_space<vmem>>, %arg9: memref<384x512xf32, #tpu.memory_space<vmem>>, %arg10: memref<1x512xf32, #tpu.memory_space<vmem>>, %arg11: memref<512x256xf32, #tpu.memory_space<vmem>>, %arg12: memref<1x256xf32, #tpu.memory_space<vmem>>, %arg13: memref<8x256xf32, #tpu.memory_space<vmem>>) attributes {dimension_semantics = [#tpu.dimension_semantics<parallel>], iteration_bounds = array<i64: 1>, scalar_prefetch = 0 : i64, scratch_operands = 0 : i64, tpu.core_type = #tpu.core_type<tc>, window_params = [{transform_indices = @transform_0, window_bounds = array<i64: 8, 384>}, {pipeline_mode = #tpu.pipeline_mode<synchronous>, transform_indices = @transform_1, window_bounds = array<i64: 384, 384>}, {pipeline_mode = #tpu.pipeline_mode<synchronous>, transform_indices = @transform_2, window_bounds = array<i64: 1, 384>}, {pipeline_mode = #tpu.pipeline_mode<synchronous>, transform_indices = @transform_3, window_bounds = array<i64: 384, 384>}, {pipeline_mode = #tpu.pipeline_mode<synchronous>, transform_indices = @transform_4, window_bounds = array<i64: 1, 384>}, {pipeline_mode = #tpu.pipeline_mode<synchronous>, transform_indices = @transform_5, window_bounds = array<i64: 384, 256>}, {pipeline_mode = #tpu.pipeline_mode<synchronous>, transform_indices = @transform_6, window_bounds = array<i64: 1, 256>}, {pipeline_mode = #tpu.pipeline_mode<synchronous>, transform_indices = @transform_7, window_bounds = array<i64: 256, 512>}, {pipeline_mode = #tpu.pipeline_mode<synchronous>, transform_indices = @transform_8, window_bounds = array<i64: 384, 512>}, {pipeline_mode = #tpu.pipeline_mode<synchronous>, transform_indices = @transform_9, window_bounds = array<i64: 1, 512>}, {pipeline_mode = #tpu.pipeline_mode<synchronous>, transform_indices = @transform_10, window_bounds = array<i64: 512, 256>}, {pipeline_mode = #tpu.pipeline_mode<synchronous>, transform_indices = @transform_11, window_bounds = array<i64: 1, 256>}, {transform_indices = @transform_12, window_bounds = array<i64: 8, 256>}]} {
    %c0 = arith.constant 0 : index
    %c0_0 = arith.constant 0 : index
    %0 = vector.load %arg1[%c0, %c0_0] : memref<8x384xf32, #tpu.memory_space<vmem>>, vector<8x384xf32>
    %c0_1 = arith.constant 0 : index
    %c0_2 = arith.constant 0 : index
    %1 = vector.load %arg2[%c0_1, %c0_2] : memref<384x384xf32, #tpu.memory_space<vmem>>, vector<384x384xf32>
    %cst = arith.constant dense<0.000000e+00> : vector<8x384xf32>
    %2 = tpu.matmul %0, %1, %cst {dimension_numbers = #tpu.dot_dimension_numbers<[1], [0], [0], [1], [0, 0, 1, 1], [], []>} : vector<8x384xf32>, vector<384x384xf32>, vector<8x384xf32> -> vector<8x384xf32>
    %c0_3 = arith.constant 0 : index
    %c0_4 = arith.constant 0 : index
    %3 = vector.load %arg3[%c0_3, %c0_4] : memref<1x384xf32, #tpu.memory_space<vmem>>, vector<1x384xf32>
    %4 = vector.broadcast %3 : vector<1x384xf32> to vector<8x384xf32>
    %5 = arith.addf %2, %4 : vector<8x384xf32>
    %cst_5 = arith.constant 0.000000e+00 : f32
    %6 = vector.broadcast %cst_5 : f32 to vector<8x384xf32>
    %7 = arith.maximumf %5, %6 : vector<8x384xf32>
    %c0_6 = arith.constant 0 : index
    %c0_7 = arith.constant 0 : index
    %8 = vector.load %arg4[%c0_6, %c0_7] : memref<384x384xf32, #tpu.memory_space<vmem>>, vector<384x384xf32>
    %cst_8 = arith.constant dense<0.000000e+00> : vector<8x384xf32>
    %9 = tpu.matmul %7, %8, %cst_8 {dimension_numbers = #tpu.dot_dimension_numbers<[1], [0], [0], [1], [0, 0, 1, 1], [], []>} : vector<8x384xf32>, vector<384x384xf32>, vector<8x384xf32> -> vector<8x384xf32>
    %c0_9 = arith.constant 0 : index
    %c0_10 = arith.constant 0 : index
    %10 = vector.load %arg5[%c0_9, %c0_10] : memref<1x384xf32, #tpu.memory_space<vmem>>, vector<1x384xf32>
    %11 = vector.broadcast %10 : vector<1x384xf32> to vector<8x384xf32>
    %12 = arith.addf %9, %11 : vector<8x384xf32>
    %cst_11 = arith.constant 0.000000e+00 : f32
    %13 = vector.broadcast %cst_11 : f32 to vector<8x384xf32>
    %14 = arith.maximumf %12, %13 : vector<8x384xf32>
    %c0_12 = arith.constant 0 : index
    %c0_13 = arith.constant 0 : index
    %15 = vector.load %arg6[%c0_12, %c0_13] : memref<384x256xf32, #tpu.memory_space<vmem>>, vector<384x256xf32>
    %cst_14 = arith.constant dense<0.000000e+00> : vector<8x256xf32>
    %16 = tpu.matmul %14, %15, %cst_14 {dimension_numbers = #tpu.dot_dimension_numbers<[1], [0], [0], [1], [0, 0, 1, 1], [], []>} : vector<8x384xf32>, vector<384x256xf32>, vector<8x256xf32> -> vector<8x256xf32>
    %c0_15 = arith.constant 0 : index
    %c0_16 = arith.constant 0 : index
    %17 = vector.load %arg7[%c0_15, %c0_16] : memref<1x256xf32, #tpu.memory_space<vmem>>, vector<1x256xf32>
    %18 = vector.broadcast %17 : vector<1x256xf32> to vector<8x256xf32>
    %19 = arith.addf %16, %18 : vector<8x256xf32>
    %c0_17 = arith.constant 0 : index
    %c0_18 = arith.constant 0 : index
    %20 = vector.load %arg8[%c0_17, %c0_18] : memref<256x512xf32, #tpu.memory_space<vmem>>, vector<256x512xf32>
    %cst_19 = arith.constant dense<0.000000e+00> : vector<8x512xf32>
    %21 = tpu.matmul %19, %20, %cst_19 {dimension_numbers = #tpu.dot_dimension_numbers<[1], [0], [0], [1], [0, 0, 1, 1], [], []>} : vector<8x256xf32>, vector<256x512xf32>, vector<8x512xf32> -> vector<8x512xf32>
    %c0_20 = arith.constant 0 : index
    %c0_21 = arith.constant 0 : index
    %22 = vector.load %arg9[%c0_20, %c0_21] : memref<384x512xf32, #tpu.memory_space<vmem>>, vector<384x512xf32>
    %cst_22 = arith.constant dense<0.000000e+00> : vector<8x512xf32>
    %23 = tpu.matmul %0, %22, %cst_22 {dimension_numbers = #tpu.dot_dimension_numbers<[1], [0], [0], [1], [0, 0, 1, 1], [], []>} : vector<8x384xf32>, vector<384x512xf32>, vector<8x512xf32> -> vector<8x512xf32>
    %24 = arith.addf %21, %23 : vector<8x512xf32>
    %c0_23 = arith.constant 0 : index
    %c0_24 = arith.constant 0 : index
    %25 = vector.load %arg10[%c0_23, %c0_24] : memref<1x512xf32, #tpu.memory_space<vmem>>, vector<1x512xf32>
    %26 = vector.broadcast %25 : vector<1x512xf32> to vector<8x512xf32>
    %27 = arith.addf %24, %26 : vector<8x512xf32>
    %cst_25 = arith.constant 0.000000e+00 : f32
    %28 = vector.broadcast %cst_25 : f32 to vector<8x512xf32>
    %29 = arith.maximumf %27, %28 : vector<8x512xf32>
    %c0_26 = arith.constant 0 : index
    %c0_27 = arith.constant 0 : index
    %30 = vector.load %arg11[%c0_26, %c0_27] : memref<512x256xf32, #tpu.memory_space<vmem>>, vector<512x256xf32>
    %cst_28 = arith.constant dense<0.000000e+00> : vector<8x256xf32>
    %31 = tpu.matmul %29, %30, %cst_28 {dimension_numbers = #tpu.dot_dimension_numbers<[1], [0], [0], [1], [0, 0, 1, 1], [], []>} : vector<8x512xf32>, vector<512x256xf32>, vector<8x256xf32> -> vector<8x256xf32>
    %c0_29 = arith.constant 0 : index
    %c0_30 = arith.constant 0 : index
    %32 = vector.load %arg12[%c0_29, %c0_30] : memref<1x256xf32, #tpu.memory_space<vmem>>, vector<1x256xf32>
    %33 = vector.broadcast %32 : vector<1x256xf32> to vector<8x256xf32>
    %34 = arith.addf %31, %33 : vector<8x256xf32>
    %c0_31 = arith.constant 0 : index
    %c0_32 = arith.constant 0 : index
    %35 = vector.load %arg13[%c0_31, %c0_32] : memref<8x256xf32, #tpu.memory_space<vmem>>, vector<8x256xf32>
    tpu.vector_store %arg13[%c0_31, %c0_32], %34 {strides = array<i32>} : memref<8x256xf32, #tpu.memory_space<vmem>>, vector<8x256xf32>,
    return
  }
  func.func @transform_0(%arg0: i32) -> (i32, i32) {
    %c0_i32 = arith.constant 0 : i32
    %c0_i32_0 = arith.constant 0 : i32
    return %arg0, %c0_i32 : i32, i32
  }
  func.func @transform_1(%arg0: i32) -> (i32, i32) {
    %c0_i32 = arith.constant 0 : i32
    %c0_i32_0 = arith.constant 0 : i32
    %c0_i32_1 = arith.constant 0 : i32
    return %c0_i32, %c0_i32_0 : i32, i32
  }
  func.func @transform_2(%arg0: i32) -> (i32, i32) {
    %c0_i32 = arith.constant 0 : i32
    %c0_i32_0 = arith.constant 0 : i32
    %c0_i32_1 = arith.constant 0 : i32
    return %c0_i32, %c0_i32_0 : i32, i32
  }
  func.func @transform_3(%arg0: i32) -> (i32, i32) {
    %c0_i32 = arith.constant 0 : i32
    %c0_i32_0 = arith.constant 0 : i32
    %c0_i32_1 = arith.constant 0 : i32
    return %c0_i32, %c0_i32_0 : i32, i32
  }
  func.func @transform_4(%arg0: i32) -> (i32, i32) {
    %c0_i32 = arith.constant 0 : i32
    %c0_i32_0 = arith.constant 0 : i32
    %c0_i32_1 = arith.constant 0 : i32
    return %c0_i32, %c0_i32_0 : i32, i32
  }
  func.func @transform_5(%arg0: i32) -> (i32, i32) {
    %c0_i32 = arith.constant 0 : i32
    %c0_i32_0 = arith.constant 0 : i32
    %c0_i32_1 = arith.constant 0 : i32
    return %c0_i32, %c0_i32_0 : i32, i32
  }
  func.func @transform_6(%arg0: i32) -> (i32, i32) {
    %c0_i32 = arith.constant 0 : i32
    %c0_i32_0 = arith.constant 0 : i32
    %c0_i32_1 = arith.constant 0 : i32
    return %c0_i32, %c0_i32_0 : i32, i32
  }
  func.func @transform_7(%arg0: i32) -> (i32, i32) {
    %c0_i32 = arith.constant 0 : i32
    %c0_i32_0 = arith.constant 0 : i32
    %c0_i32_1 = arith.constant 0 : i32
    return %c0_i32, %c0_i32_0 : i32, i32
  }
  func.func @transform_8(%arg0: i32) -> (i32, i32) {
    %c0_i32 = arith.constant 0 : i32
    %c0_i32_0 = arith.constant 0 : i32
    %c0_i32_1 = arith.constant 0 : i32
    return %c0_i32, %c0_i32_0 : i32, i32
  }
  func.func @transform_9(%arg0: i32) -> (i32, i32) {
    %c0_i32 = arith.constant 0 : i32
    %c0_i32_0 = arith.constant 0 : i32
    %c0_i32_1 = arith.constant 0 : i32
    return %c0_i32, %c0_i32_0 : i32, i32
  }
  func.func @transform_10(%arg0: i32) -> (i32, i32) {
    %c0_i32 = arith.constant 0 : i32
    %c0_i32_0 = arith.constant 0 : i32
    %c0_i32_1 = arith.constant 0 : i32
    return %c0_i32, %c0_i32_0 : i32, i32
  }
  func.func @transform_11(%arg0: i32) -> (i32, i32) {
    %c0_i32 = arith.constant 0 : i32
    %c0_i32_0 = arith.constant 0 : i32
    %c0_i32_1 = arith.constant 0 : i32
    return %c0_i32, %c0_i32_0 : i32, i32
  }
  func.func @transform_12(%arg0: i32) -> (i32, i32) {
    %c0_i32 = arith.constant 0 : i32
    %c0_i32_0 = arith.constant 0 : i32
    return %arg0, %c0_i32 : i32, i32
  }
}

</mosaic_0001>

<llo_original>
// kernel: simple_net_forward.1
$region0: #{simple_net_forward.1}
  #allocation0 [shape = 'u32[]', space=smem, size = 0x4, offset = 0x4, fixed_abs, tag = 'smem constant byte address 0x4 - core index']
  #allocation1 [shape = 'u32[144,128]{1,0:T(1,128)}', space=vmem, size = 0x12000, scoped, tag = 'internal scratch']
  %s0 = inlined_call_operand.vmem [shape: f32[8,384], index: 0, kind: input, shape index: {}]
  %s1 = inlined_call_operand.hbm [shape: f32[384,384], index: 1, kind: input, shape index: {}]
  %s2 = inlined_call_operand.vmem [shape: f32[1,384], index: 2, kind: input, shape index: {}]
  %s3 = inlined_call_operand.hbm [shape: f32[384,384], index: 3, kind: input, shape index: {}]
  %s4 = inlined_call_operand.vmem [shape: f32[1,384], index: 4, kind: input, shape index: {}]
  %s5 = inlined_call_operand.hbm [shape: f32[384,256], index: 5, kind: input, shape index: {}]
  %s6 = inlined_call_operand.vmem [shape: f32[1,256], index: 6, kind: input, shape index: {}]
  %s7 = inlined_call_operand.hbm [shape: f32[256,512], index: 7, kind: input, shape index: {}]
  %s8 = inlined_call_operand.hbm [shape: f32[384,512], index: 8, kind: input, shape index: {}]
  %s9 = inlined_call_operand.vmem [shape: f32[1,512], index: 9, kind: input, shape index: {}]
  %s10 = inlined_call_operand.hbm [shape: f32[512,256], index: 10, kind: input, shape index: {}]
  %s11 = inlined_call_operand.vmem [shape: f32[1,256], index: 11, kind: input, shape index: {}]
  %s12 = inlined_call_operand.hbm [shape: f32[8,256], index: 12, kind: output, shape index: {}]
  %s13 = sld [smem:[#allocation0]]
  $region82: #{simple_net_forward.1} parent=0
    _
  %s15 = ssub.s32 1, %s13
  %s16 = scalar_select 0, %s15, %s13
  $region1: #{simple_net_forward.1} parent=0
    #allocation2 [shape = 'u8[589824]{0}', space=vmem, size = 0x90000, scoped, tag = 'input window, operand 1, single buffered']
    #allocation3 [shape = 's32[1]{0}', space=sflag, size = 0x4, scoped, tag = 'scoped memory for simple_net_forward.1']
    #allocation4 [shape = 's32[1]{0}', space=sflag, size = 0x4, scoped, tag = 'scoped memory for simple_net_forward.1']
    #allocation5 [shape = 'u8[589824]{0}', space=vmem, size = 0x90000, scoped, tag = 'input window, operand 3, single buffered']
    #allocation6 [shape = 's32[1]{0}', space=sflag, size = 0x4, scoped, tag = 'scoped memory for simple_net_forward.1']
    #allocation7 [shape = 'u8[393216]{0}', space=vmem, size = 0x60000, scoped, tag = 'input window, operand 5, single buffered']
    #allocation8 [shape = 'u8[524288]{0}', space=vmem, size = 0x80000, scoped, tag = 'input window, operand 7, single buffered']
    #allocation9 [shape = 's32[1]{0}', space=sflag, size = 0x4, scoped, tag = 'scoped memory for simple_net_forward.1']
    #allocation10 [shape = 'u8[786432]{0}', space=vmem, size = 0xc0000, scoped, tag = 'input window, operand 8, single buffered']
    #allocation11 [shape = 'u8[524288]{0}', space=vmem, size = 0x80000, scoped, tag = 'input window, operand 10, single buffered']
    #allocation12 [shape = 's32[1]{0}', space=sflag, size = 0x4, scoped, tag = 'scoped memory for simple_net_forward.1']
    #allocation13 [shape = 'u8[8192]{0}', space=vmem, size = 0x2000, scoped, tag = 'output window, operand 0, single buffered']
    %17 = vsyncpa [#allocation3], 0
    %18 = vsyncpa [#allocation6], 0
    %19 = vsyncpa [#allocation9], 0
    %20 = vsyncpa [#allocation12], 0
    %21 = vsyncpa [#allocation4], 0
    // Predicated region
    $region2: #{simple_net_forward.1} parent=1 // pred_check
      _
    $region3: #{simple_net_forward.1} parent=1 // pred_check_branch
      %23 = sbr.rel (0) target = $region5
    $region4: #{simple_net_forward.1} parent=1 // pred_region
      _
    $region5: #{simple_net_forward.1} parent=1 // pred_fallthru
      _
    // Predicated region
    $region6: #{simple_net_forward.1} parent=1 // pred_check
      _
    $region7: #{simple_net_forward.1} parent=1 // pred_check_branch
      %25 = sbr.rel (0) target = $region9
    $region8: #{simple_net_forward.1} parent=1 // pred_region
      %s27 = ssub.s32 18432, 18432
      %28 = vsyncadd [#allocation3], %s27
      %s29 = sshll.u32 [#allocation2], 4
      %s30 = int_to_ptr.vmem [resolvable:$true] %s29
      %35 = dma.hbm_to_vmem [thread:$0]  %s1, 18432, %s30, [#allocation3], 384, 384, 24
    $region9: #{simple_net_forward.1} parent=1 // pred_fallthru
      _
    // Predicated region
    $region10: #{simple_net_forward.1} parent=1 // pred_check
      _
    $region11: #{simple_net_forward.1} parent=1 // pred_check_branch
      %37 = sbr.rel (0) target = $region13
    $region12: #{simple_net_forward.1} parent=1 // pred_region
      _
    $region13: #{simple_net_forward.1} parent=1 // pred_fallthru
      _
    // Predicated region
    $region14: #{simple_net_forward.1} parent=1 // pred_check
      _
    $region15: #{simple_net_forward.1} parent=1 // pred_check_branch
      %39 = sbr.rel (0) target = $region17
    $region16: #{simple_net_forward.1} parent=1 // pred_region
      %s41 = ssub.s32 18432, 18432
      %42 = vsyncadd [#allocation6], %s41
      %s43 = sshll.u32 [#allocation5], 4
      %s44 = int_to_ptr.vmem [resolvable:$true] %s43
      %49 = dma.hbm_to_vmem [thread:$0]  %s3, 18432, %s44, [#allocation6], 384, 384, 24
    $region17: #{simple_net_forward.1} parent=1 // pred_fallthru
      _
    // Predicated region
    $region18: #{simple_net_forward.1} parent=1 // pred_check
      _
    $region19: #{simple_net_forward.1} parent=1 // pred_check_branch
      %51 = sbr.rel (0) target = $region21
    $region20: #{simple_net_forward.1} parent=1 // pred_region
      _
    $region21: #{simple_net_forward.1} parent=1 // pred_fallthru
      _
    // Predicated region
    $region22: #{simple_net_forward.1} parent=1 // pred_check
      _
    $region23: #{simple_net_forward.1} parent=1 // pred_check_branch
      %53 = sbr.rel (0) target = $region25
    $region24: #{simple_net_forward.1} parent=1 // pred_region
      %s55 = ssub.s32 12288, 12288
      %56 = vsyncadd [#allocation6], %s55
      %s57 = sshll.u32 [#allocation7], 4
      %s58 = int_to_ptr.vmem [resolvable:$true] %s57
      %63 = dma.hbm_to_vmem [thread:$0]  %s5, 12288, %s58, [#allocation6], 256, 256, 16
    $region25: #{simple_net_forward.1} parent=1 // pred_fallthru
      _
    // Predicated region
    $region26: #{simple_net_forward.1} parent=1 // pred_check
      _
    $region27: #{simple_net_forward.1} parent=1 // pred_check_branch
      %65 = sbr.rel (0) target = $region29
    $region28: #{simple_net_forward.1} parent=1 // pred_region
      _
    $region29: #{simple_net_forward.1} parent=1 // pred_fallthru
      _
    // Predicated region
    $region30: #{simple_net_forward.1} parent=1 // pred_check
      _
    $region31: #{simple_net_forward.1} parent=1 // pred_check_branch
      %67 = sbr.rel (0) target = $region33
    $region32: #{simple_net_forward.1} parent=1 // pred_region
      %s69 = ssub.s32 16384, 16384
      %70 = vsyncadd [#allocation9], %s69
      %s71 = sshll.u32 [#allocation8], 4
      %s72 = int_to_ptr.vmem [resolvable:$true] %s71
      %77 = dma.hbm_to_vmem [thread:$0]  %s7, 16384, %s72, [#allocation9], 512, 512, 32
    $region33: #{simple_net_forward.1} parent=1 // pred_fallthru
      _
    // Predicated region
    $region34: #{simple_net_forward.1} parent=1 // pred_check
      _
    $region35: #{simple_net_forward.1} parent=1 // pred_check_branch
      %79 = sbr.rel (0) target = $region37
    $region36: #{simple_net_forward.1} parent=1 // pred_region
      %s81 = ssub.s32 24576, 24576
      %82 = vsyncadd [#allocation9], %s81
      %s83 = sshll.u32 [#allocation10], 4
      %s84 = int_to_ptr.vmem [resolvable:$true] %s83
      %89 = dma.hbm_to_vmem [thread:$0]  %s8, 24576, %s84, [#allocation9], 512, 512, 32
    $region37: #{simple_net_forward.1} parent=1 // pred_fallthru
      _
    // Predicated region
    $region38: #{simple_net_forward.1} parent=1 // pred_check
      _
    $region39: #{simple_net_forward.1} parent=1 // pred_check_branch
      %91 = sbr.rel (0) target = $region41
    $region40: #{simple_net_forward.1} parent=1 // pred_region
      _
    $region41: #{simple_net_forward.1} parent=1 // pred_fallthru
      _
    // Predicated region
    $region42: #{simple_net_forward.1} parent=1 // pred_check
      _
    $region43: #{simple_net_forward.1} parent=1 // pred_check_branch
      %93 = sbr.rel (0) target = $region45
    $region44: #{simple_net_forward.1} parent=1 // pred_region
      %s95 = ssub.s32 16384, 16384
      %96 = vsyncadd [#allocation12], %s95
      %s97 = sshll.u32 [#allocation11], 4
      %s98 = int_to_ptr.vmem [resolvable:$true] %s97
      %103 = dma.hbm_to_vmem [thread:$0]  %s10, 16384, %s98, [#allocation12], 256, 256, 16
    $region45: #{simple_net_forward.1} parent=1 // pred_fallthru
      _
    // Predicated region
    $region46: #{simple_net_forward.1} parent=1 // pred_check
      _
    $region47: #{simple_net_forward.1} parent=1 // pred_check_branch
      %105 = sbr.rel (0) target = $region49
    $region48: #{simple_net_forward.1} parent=1 // pred_region
      _
    $region49: #{simple_net_forward.1} parent=1 // pred_fallthru
      _
    // Predicated region
    $region50: #{simple_net_forward.1} parent=1 // pred_check
      _
    $region51: #{simple_net_forward.1} parent=1 // pred_check_branch
      %107 = sbr.rel (0) target = $region53
    $region52: #{simple_net_forward.1} parent=1 // pred_region
      %108 = dma.done [#allocation3], 18432
    $region53: #{simple_net_forward.1} parent=1 // pred_fallthru
      _
    // Predicated region
    $region54: #{simple_net_forward.1} parent=1 // pred_check
      _
    $region55: #{simple_net_forward.1} parent=1 // pred_check_branch
      %110 = sbr.rel (0) target = $region57
    $region56: #{simple_net_forward.1} parent=1 // pred_region
      %111 = dma.done [#allocation6], 18432
    $region57: #{simple_net_forward.1} parent=1 // pred_fallthru
      _
    // Predicated region
    $region58: #{simple_net_forward.1} parent=1 // pred_check
      _
    $region59: #{simple_net_forward.1} parent=1 // pred_check_branch
      %113 = sbr.rel (0) target = $region61
    $region60: #{simple_net_forward.1} parent=1 // pred_region
      %114 = dma.done [#allocation6], 12288
    $region61: #{simple_net_forward.1} parent=1 // pred_fallthru
      _
    // Predicated region
    $region62: #{simple_net_forward.1} parent=1 // pred_check
      _
    $region63: #{simple_net_forward.1} parent=1 // pred_check_branch
      %116 = sbr.rel (0) target = $region65
    $region64: #{simple_net_forward.1} parent=1 // pred_region
      %117 = dma.done [#allocation9], 16384
    $region65: #{simple_net_forward.1} parent=1 // pred_fallthru
      _
    // Predicated region
    $region66: #{simple_net_forward.1} parent=1 // pred_check
      _
    $region67: #{simple_net_forward.1} parent=1 // pred_check_branch
      %119 = sbr.rel (0) target = $region69
    $region68: #{simple_net_forward.1} parent=1 // pred_region
      %120 = dma.done [#allocation9], 24576
    $region69: #{simple_net_forward.1} parent=1 // pred_fallthru
      _
    // Predicated region
    $region70: #{simple_net_forward.1} parent=1 // pred_check
      _
    $region71: #{simple_net_forward.1} parent=1 // pred_check_branch
      %122 = sbr.rel (0) target = $region73
    $region72: #{simple_net_forward.1} parent=1 // pred_region
      %123 = dma.done [#allocation12], 16384
    $region73: #{simple_net_forward.1} parent=1 // pred_fallthru
      _
    %v124 = vld [vmem:[%s0] sm:$0xff]
    %v125 = vld [vmem:[%s0 + $0x8] sm:$0xff]
    %v126 = vld [vmem:[%s0 + $0x10] sm:$0xff]
    %v127 = vld [vmem:[#allocation2] sm:$0xff]
    %v128 = vld [vmem:[#allocation2 + $0x8] sm:$0xff]
    %v129 = vld [vmem:[#allocation2 + $0x10] sm:$0xff]
    %v130 = vld [vmem:[#allocation2 + $0x18] sm:$0xff]
    %v131 = vld [vmem:[#allocation2 + $0x20] sm:$0xff]
    %v132 = vld [vmem:[#allocation2 + $0x28] sm:$0xff]
    %v133 = vld [vmem:[#allocation2 + $0x30] sm:$0xff]
    %v134 = vld [vmem:[#allocation2 + $0x38] sm:$0xff]
    %v135 = vld [vmem:[#allocation2 + $0x40] sm:$0xff]
    %v136 = vld [vmem:[#allocation2 + $0x48] sm:$0xff]
    %v137 = vld [vmem:[#allocation2 + $0x50] sm:$0xff]
    %v138 = vld [vmem:[#allocation2 + $0x58] sm:$0xff]
    %v139 = vld [vmem:[#allocation2 + $0x60] sm:$0xff]
    %v140 = vld [vmem:[#allocation2 + $0x68] sm:$0xff]
    %v141 = vld [vmem:[#allocation2 + $0x70] sm:$0xff]
    %v142 = vld [vmem:[#allocation2 + $0x78] sm:$0xff]
    %v143 = vld [vmem:[#allocation2 + $0x80] sm:$0xff]
    %v144 = vld [vmem:[#allocation2 + $0x88] sm:$0xff]
    %v145 = vld [vmem:[#allocation2 + $0x90] sm:$0xff]
    %v146 = vld [vmem:[#allocation2 + $0x98] sm:$0xff]
    %v147 = vld [vmem:[#allocation2 + $0xa0] sm:$0xff]
    %v148 = vld [vmem:[#allocation2 + $0xa8] sm:$0xff]
    %v149 = vld [vmem:[#allocation2 + $0xb0] sm:$0xff]
    %v150 = vld [vmem:[#allocation2 + $0xb8] sm:$0xff]
    %v151 = vld [vmem:[#allocation2 + $0xc0] sm:$0xff]
    %v152 = vld [vmem:[#allocation2 + $0xc8] sm:$0xff]
    %v153 = vld [vmem:[#allocation2 + $0xd0] sm:$0xff]
    %v154 = vld [vmem:[#allocation2 + $0xd8] sm:$0xff]
    %v155 = vld [vmem:[#allocation2 + $0xe0] sm:$0xff]
    %v156 = vld [vmem:[#allocation2 + $0xe8] sm:$0xff]
    %v157 = vld [vmem:[#allocation2 + $0xf0] sm:$0xff]
    %v158 = vld [vmem:[#allocation2 + $0xf8] sm:$0xff]
    %v159 = vld [vmem:[#allocation2 + $0x100] sm:$0xff]
    %v160 = vld [vmem:[#allocation2 + $0x108] sm:$0xff]
    %v161 = vld [vmem:[#allocation2 + $0x110] sm:$0xff]
    %v162 = vld [vmem:[#allocation2 + $0x118] sm:$0xff]
    %v163 = vld [vmem:[#allocation2 + $0x120] sm:$0xff]
    %v164 = vld [vmem:[#allocation2 + $0x128] sm:$0xff]
    %v165 = vld [vmem:[#allocation2 + $0x130] sm:$0xff]
    %v166 = vld [vmem:[#allocation2 + $0x138] sm:$0xff]
    %v167 = vld [vmem:[#allocation2 + $0x140] sm:$0xff]
    %v168 = vld [vmem:[#allocation2 + $0x148] sm:$0xff]
    %v169 = vld [vmem:[#allocation2 + $0x150] sm:$0xff]
    %v170 = vld [vmem:[#allocation2 + $0x158] sm:$0xff]
    %v171 = vld [vmem:[#allocation2 + $0x160] sm:$0xff]
    %v172 = vld [vmem:[#allocation2 + $0x168] sm:$0xff]
    %v173 = vld [vmem:[#allocation2 + $0x170] sm:$0xff]
    %v174 = vld [vmem:[#allocation2 + $0x178] sm:$0xff]
    %v175 = vld [vmem:[#allocation2 + $0x180] sm:$0xff]
    %v176 = vld [vmem:[#allocation2 + $0x188] sm:$0xff]
    %v177 = vld [vmem:[#allocation2 + $0x190] sm:$0xff]
    %v178 = vld [vmem:[#allocation2 + $0x198] sm:$0xff]
    %v179 = vld [vmem:[#allocation2 + $0x1a0] sm:$0xff]
    %v180 = vld [vmem:[#allocation2 + $0x1a8] sm:$0xff]
    %v181 = vld [vmem:[#allocation2 + $0x1b0] sm:$0xff]
    %v182 = vld [vmem:[#allocation2 + $0x1b8] sm:$0xff]
    %v183 = vld [vmem:[#allocation2 + $0x1c0] sm:$0xff]
    %v184 = vld [vmem:[#allocation2 + $0x1c8] sm:$0xff]
    %v185 = vld [vmem:[#allocation2 + $0x1d0] sm:$0xff]
    %v186 = vld [vmem:[#allocation2 + $0x1d8] sm:$0xff]
    %v187 = vld [vmem:[#allocation2 + $0x1e0] sm:$0xff]
    %v188 = vld [vmem:[#allocation2 + $0x1e8] sm:$0xff]
    %v189 = vld [vmem:[#allocation2 + $0x1f0] sm:$0xff]
    %v190 = vld [vmem:[#allocation2 + $0x1f8] sm:$0xff]
    %v191 = vld [vmem:[#allocation2 + $0x200] sm:$0xff]
    %v192 = vld [vmem:[#allocation2 + $0x208] sm:$0xff]
    %v193 = vld [vmem:[#allocation2 + $0x210] sm:$0xff]
    %v194 = vld [vmem:[#allocation2 + $0x218] sm:$0xff]
    %v195 = vld [vmem:[#allocation2 + $0x220] sm:$0xff]
    %v196 = vld [vmem:[#allocation2 + $0x228] sm:$0xff]
    %v197 = vld [vmem:[#allocation2 + $0x230] sm:$0xff]
    %v198 = vld [vmem:[#allocation2 + $0x238] sm:$0xff]
    %v199 = vld [vmem:[#allocation2 + $0x240] sm:$0xff]
    %v200 = vld [vmem:[#allocation2 + $0x248] sm:$0xff]
    %v201 = vld [vmem:[#allocation2 + $0x250] sm:$0xff]
    %v202 = vld [vmem:[#allocation2 + $0x258] sm:$0xff]
    %v203 = vld [vmem:[#allocation2 + $0x260] sm:$0xff]
    %v204 = vld [vmem:[#allocation2 + $0x268] sm:$0xff]
    %v205 = vld [vmem:[#allocation2 + $0x270] sm:$0xff]
    %v206 = vld [vmem:[#allocation2 + $0x278] sm:$0xff]
    %v207 = vld [vmem:[#allocation2 + $0x280] sm:$0xff]
    %v208 = vld [vmem:[#allocation2 + $0x288] sm:$0xff]
    %v209 = vld [vmem:[#allocation2 + $0x290] sm:$0xff]
    %v210 = vld [vmem:[#allocation2 + $0x298] sm:$0xff]
    %v211 = vld [vmem:[#allocation2 + $0x2a0] sm:$0xff]
    %v212 = vld [vmem:[#allocation2 + $0x2a8] sm:$0xff]
    %v213 = vld [vmem:[#allocation2 + $0x2b0] sm:$0xff]
    %v214 = vld [vmem:[#allocation2 + $0x2b8] sm:$0xff]
    %v215 = vld [vmem:[#allocation2 + $0x2c0] sm:$0xff]
    %v216 = vld [vmem:[#allocation2 + $0x2c8] sm:$0xff]
    %v217 = vld [vmem:[#allocation2 + $0x2d0] sm:$0xff]
    %v218 = vld [vmem:[#allocation2 + $0x2d8] sm:$0xff]
    %v219 = vld [vmem:[#allocation2 + $0x2e0] sm:$0xff]
    %v220 = vld [vmem:[#allocation2 + $0x2e8] sm:$0xff]
    %v221 = vld [vmem:[#allocation2 + $0x2f0] sm:$0xff]
    %v222 = vld [vmem:[#allocation2 + $0x2f8] sm:$0xff]
    %v223 = vld [vmem:[#allocation2 + $0x300] sm:$0xff]
    %v224 = vld [vmem:[#allocation2 + $0x308] sm:$0xff]
    %v225 = vld [vmem:[#allocation2 + $0x310] sm:$0xff]
    %v226 = vld [vmem:[#allocation2 + $0x318] sm:$0xff]
    %v227 = vld [vmem:[#allocation2 + $0x320] sm:$0xff]
    %v228 = vld [vmem:[#allocation2 + $0x328] sm:$0xff]
    %v229 = vld [vmem:[#allocation2 + $0x330] sm:$0xff]
    %v230 = vld [vmem:[#allocation2 + $0x338] sm:$0xff]
    %v231 = vld [vmem:[#allocation2 + $0x340] sm:$0xff]
    %v232 = vld [vmem:[#allocation2 + $0x348] sm:$0xff]
    %v233 = vld [vmem:[#allocation2 + $0x350] sm:$0xff]
    %v234 = vld [vmem:[#allocation2 + $0x358] sm:$0xff]
    %v235 = vld [vmem:[#allocation2 + $0x360] sm:$0xff]
    %v236 = vld [vmem:[#allocation2 + $0x368] sm:$0xff]
    %v237 = vld [vmem:[#allocation2 + $0x370] sm:$0xff]
    %v238 = vld [vmem:[#allocation2 + $0x378] sm:$0xff]
    %v239 = vld [vmem:[#allocation2 + $0x380] sm:$0xff]
    %v240 = vld [vmem:[#allocation2 + $0x388] sm:$0xff]
    %v241 = vld [vmem:[#allocation2 + $0x390] sm:$0xff]
    %v242 = vld [vmem:[#allocation2 + $0x398] sm:$0xff]
    %v243 = vld [vmem:[#allocation2 + $0x3a0] sm:$0xff]
    %v244 = vld [vmem:[#allocation2 + $0x3a8] sm:$0xff]
    %v245 = vld [vmem:[#allocation2 + $0x3b0] sm:$0xff]
    %v246 = vld [vmem:[#allocation2 + $0x3b8] sm:$0xff]
    %v247 = vld [vmem:[#allocation2 + $0x3c0] sm:$0xff]
    %v248 = vld [vmem:[#allocation2 + $0x3c8] sm:$0xff]
    %v249 = vld [vmem:[#allocation2 + $0x3d0] sm:$0xff]
    %v250 = vld [vmem:[#allocation2 + $0x3d8] sm:$0xff]
    %v251 = vld [vmem:[#allocation2 + $0x3e0] sm:$0xff]
    %v252 = vld [vmem:[#allocation2 + $0x3e8] sm:$0xff]
    %v253 = vld [vmem:[#allocation2 + $0x3f0] sm:$0xff]
    %v254 = vld [vmem:[#allocation2 + $0x3f8] sm:$0xff]
    %v255 = vld [vmem:[#allocation2 + $0x400] sm:$0xff]
    %v256 = vld [vmem:[#allocation2 + $0x408] sm:$0xff]
    %v257 = vld [vmem:[#allocation2 + $0x410] sm:$0xff]
    %v258 = vld [vmem:[#allocation2 + $0x418] sm:$0xff]
    %v259 = vld [vmem:[#allocation2 + $0x420] sm:$0xff]
    %v260 = vld [vmem:[#allocation2 + $0x428] sm:$0xff]
    %v261 = vld [vmem:[#allocation2 + $0x430] sm:$0xff]
    %v262 = vld [vmem:[#allocation2 + $0x438] sm:$0xff]
    %v263 = vld [vmem:[#allocation2 + $0x440] sm:$0xff]
    %v264 = vld [vmem:[#allocation2 + $0x448] sm:$0xff]
    %v265 = vld [vmem:[#allocation2 + $0x450] sm:$0xff]
    %v266 = vld [vmem:[#allocation2 + $0x458] sm:$0xff]
    %v267 = vld [vmem:[#allocation2 + $0x460] sm:$0xff]
    %v268 = vld [vmem:[#allocation2 + $0x468] sm:$0xff]
    %v269 = vld [vmem:[#allocation2 + $0x470] sm:$0xff]
    %v270 = vld [vmem:[#allocation2 + $0x478] sm:$0xff]
    %v271 = vld [vmem:[%s2] sm:$0x7]
    %v273 = vlaneseq
    %v274 = vshrl.u32 %v273, 7
    %v275 = vsub.s32 0, %v274
    %v276 = vrot.slane %v271, %v275
    %v277 = vlaneseq
    %v278 = vshrl.u32 %v277, 7
    %v279 = vsub.s32 1, %v278
    %v280 = vrot.slane %v271, %v279
    %v281 = vlaneseq
    %v282 = vshrl.u32 %v281, 7
    %v283 = vsub.s32 2, %v282
    %v284 = vrot.slane %v271, %v283
    %288 = vmatprep.subr.mxu0 %v128
    %289 = vmatpush1.msra.mxu0 %v127
    %290 = vmatprep.subr.mxu0 %v131
    %291 = vmatpush1.msra.mxu0 %v130
    %292 = vmatprep.subr.mxu0 %v134
    %293 = vmatpush1.msra.mxu0 %v133
    %294 = vmatprep.subr.mxu0 %v137
    %295 = vmatpush1.msra.mxu0 %v136
    %296 = vmatprep.subr.mxu0 %v140
    %297 = vmatpush1.msra.mxu0 %v139
    %298 = vmatprep.subr.mxu0 %v143
    %299 = vmatpush1.msra.mxu0 %v142
    %300 = vmatprep.subr.mxu0 %v146
    %301 = vmatpush1.msra.mxu0 %v145
    %302 = vmatprep.subr.mxu0 %v149
    %303 = vmatpush1.msra.mxu0 %v148
    %304 = vmatprep.subr.mxu0 %v152
    %305 = vmatpush1.msra.mxu0 %v151
    %306 = vmatprep.subr.mxu0 %v155
    %307 = vmatpush1.msra.mxu0 %v154
    %308 = vmatprep.subr.mxu0 %v158
    %309 = vmatpush1.msra.mxu0 %v157
    %310 = vmatprep.subr.mxu0 %v161
    %311 = vmatpush1.msra.mxu0 %v160
    %312 = vmatprep.subr.mxu0 %v164
    %313 = vmatpush1.msra.mxu0 %v163
    %314 = vmatprep.subr.mxu0 %v167
    %315 = vmatpush1.msra.mxu0 %v166
    %316 = vmatprep.subr.mxu0 %v170
    %317 = vmatpush1.msra.mxu0 %v169
    %318 = vmatprep.subr.mxu0 %v173
    %319 = vmatpush1.msra.mxu0 %v172
    %320 = vmatprep.subr.mxu0 %v176
    %321 = vmatpush1.msra.mxu0 %v175
    %322 = vmatprep.subr.mxu0 %v179
    %323 = vmatpush1.msra.mxu0 %v178
    %324 = vmatprep.subr.mxu0 %v182
    %325 = vmatpush1.msra.mxu0 %v181
    %326 = vmatprep.subr.mxu0 %v185
    %327 = vmatpush1.msra.mxu0 %v184
    %328 = vmatprep.subr.mxu0 %v188
    %329 = vmatpush1.msra.mxu0 %v187
    %330 = vmatprep.subr.mxu0 %v191
    %331 = vmatpush1.msra.mxu0 %v190
    %332 = vmatprep.subr.mxu0 %v194
    %333 = vmatpush1.msra.mxu0 %v193
    %334 = vmatprep.subr.mxu0 %v197
    %335 = vmatpush1.msra.mxu0 %v196
    %336 = vmatprep.subr.mxu0 %v200
    %337 = vmatpush1.msra.mxu0 %v199
    %338 = vmatprep.subr.mxu0 %v203
    %339 = vmatpush1.msra.mxu0 %v202
    %340 = vmatprep.subr.mxu0 %v206
    %341 = vmatpush1.msra.mxu0 %v205
    %342 = vmatprep.subr.mxu0 %v209
    %343 = vmatpush1.msra.mxu0 %v208
    %344 = vmatprep.subr.mxu0 %v212
    %345 = vmatpush1.msra.mxu0 %v211
    %346 = vmatprep.subr.mxu0 %v215
    %347 = vmatpush1.msra.mxu0 %v214
    %348 = vmatprep.subr.mxu0 %v218
    %349 = vmatpush1.msra.mxu0 %v217
    %350 = vmatprep.subr.mxu0 %v221
    %351 = vmatpush1.msra.mxu0 %v220
    %352 = vmatprep.mubr.f32.mxu0 %v125
    %353 = vmatmul.mubr.f32.gmra.mrb[0].mxu0 %v124
    %v354 = vpop.f32.mrb[0].mxu0
    %v355 = vadd.f32 %v276, %v354
    %v356 = vpop.f32.mrb[0].mxu0
    %v357 = vadd.f32 %v280, %v356
    %358 = vdwg.mxu0
    %359 = vmatprep.subr.mxu0 %v224
    %360 = vmatpush1.msra.mxu0 %v223
    %361 = vmatprep.subr.mxu0 %v227
    %362 = vmatpush1.msra.mxu0 %v226
    %363 = vmatprep.subr.mxu0 %v230
    %364 = vmatpush1.msra.mxu0 %v229
    %365 = vmatprep.subr.mxu0 %v233
    %366 = vmatpush1.msra.mxu0 %v232
    %367 = vmatprep.subr.mxu0 %v236
    %368 = vmatpush1.msra.mxu0 %v235
    %369 = vmatprep.subr.mxu0 %v239
    %370 = vmatpush1.msra.mxu0 %v238
    %371 = vmatprep.subr.mxu0 %v242
    %372 = vmatpush1.msra.mxu0 %v241
    %373 = vmatprep.subr.mxu0 %v245
    %374 = vmatpush1.msra.mxu0 %v244
    %375 = vmatprep.subr.mxu0 %v248
    %376 = vmatpush1.msra.mxu0 %v247
    %377 = vmatprep.subr.mxu0 %v251
    %378 = vmatpush1.msra.mxu0 %v250
    %379 = vmatprep.subr.mxu0 %v254
    %380 = vmatpush1.msra.mxu0 %v253
    %381 = vmatprep.subr.mxu0 %v257
    %382 = vmatpush1.msra.mxu0 %v256
    %383 = vmatprep.subr.mxu0 %v260
    %384 = vmatpush1.msra.mxu0 %v259
    %385 = vmatprep.subr.mxu0 %v263
    %386 = vmatpush1.msra.mxu0 %v262
    %387 = vmatprep.subr.mxu0 %v266
    %388 = vmatpush1.msra.mxu0 %v265
    %389 = vmatprep.subr.mxu0 %v269
    %390 = vmatpush1.msra.mxu0 %v268
    %391 = vmatprep.subr.mxu0 0.0
    %392 = vmatpush1.msra.mxu0 0.0
    %393 = vmatprep.subr.mxu0 0.0
    %394 = vmatpush1.msra.mxu0 0.0
    %395 = vmatprep.subr.mxu0 0.0
    %396 = vmatpush1.msra.mxu0 0.0
    %397 = vmatprep.subr.mxu0 0.0
    %398 = vmatpush1.msra.mxu0 0.0
    %399 = vmatprep.subr.mxu0 0.0
    %400 = vmatpush1.msra.mxu0 0.0
    %401 = vmatprep.subr.mxu0 0.0
    %402 = vmatpush1.msra.mxu0 0.0
    %403 = vmatprep.subr.mxu0 0.0
    %404 = vmatpush1.msra.mxu0 0.0
    %405 = vmatprep.subr.mxu0 0.0
    %406 = vmatpush1.msra.mxu0 0.0
    %407 = vmatprep.subr.mxu0 0.0
    %408 = vmatpush1.msra.mxu0 0.0
    %409 = vmatprep.subr.mxu0 0.0
    %410 = vmatpush1.msra.mxu0 0.0
    %411 = vmatprep.subr.mxu0 0.0
    %412 = vmatpush1.msra.mxu0 0.0
    %413 = vmatprep.subr.mxu0 0.0
    %414 = vmatpush1.msra.mxu0 0.0
    %415 = vmatprep.subr.mxu0 0.0
    %416 = vmatpush1.msra.mxu0 0.0
    %417 = vmatprep.subr.mxu0 0.0
    %418 = vmatpush1.msra.mxu0 0.0
    %419 = vmatprep.subr.mxu0 0.0
    %420 = vmatpush1.msra.mxu0 0.0
    %421 = vmatprep.subr.mxu0 0.0
    %422 = vmatpush1.msra.mxu0 0.0
    %423 = vmatprep.mubr.f32.mxu0 0.0
    %424 = vmatmul.mubr.f32.gmra.mrb[0].mxu0 %v126
    %v425 = vpop.f32.mrb[0].mxu0
    %v426 = vadd.f32 %v355, %v425
    %v427 = vpop.f32.mrb[0].mxu0
    %v428 = vadd.f32 %v357, %v427
    %429 = vdwg.mxu0
    %430 = vmatprep.subr.mxu0 0.0
    %431 = vmatpush1.msra.mxu0 %v129
    %432 = vmatprep.subr.mxu0 0.0
    %433 = vmatpush1.msra.mxu0 %v132
    %434 = vmatprep.subr.mxu0 0.0
    %435 = vmatpush1.msra.mxu0 %v135
    %436 = vmatprep.subr.mxu0 0.0
    %437 = vmatpush1.msra.mxu0 %v138
    %438 = vmatprep.subr.mxu0 0.0
    %439 = vmatpush1.msra.mxu0 %v141
    %440 = vmatprep.subr.mxu0 0.0
    %441 = vmatpush1.msra.mxu0 %v144
    %442 = vmatprep.subr.mxu0 0.0
    %443 = vmatpush1.msra.mxu0 %v147
    %444 = vmatprep.subr.mxu0 0.0
    %445 = vmatpush1.msra.mxu0 %v150
    %446 = vmatprep.subr.mxu0 0.0
    %447 = vmatpush1.msra.mxu0 %v153
    %448 = vmatprep.subr.mxu0 0.0
    %449 = vmatpush1.msra.mxu0 %v156
    %450 = vmatprep.subr.mxu0 0.0
    %451 = vmatpush1.msra.mxu0 %v159
    %452 = vmatprep.subr.mxu0 0.0
    %453 = vmatpush1.msra.mxu0 %v162
    %454 = vmatprep.subr.mxu0 0.0
    %455 = vmatpush1.msra.mxu0 %v165
    %456 = vmatprep.subr.mxu0 0.0
    %457 = vmatpush1.msra.mxu0 %v168
    %458 = vmatprep.subr.mxu0 0.0
    %459 = vmatpush1.msra.mxu0 %v171
    %460 = vmatprep.subr.mxu0 0.0
    %461 = vmatpush1.msra.mxu0 %v174
    %462 = vmatprep.subr.mxu0 0.0
    %463 = vmatpush1.msra.mxu0 %v177
    %464 = vmatprep.subr.mxu0 0.0
    %465 = vmatpush1.msra.mxu0 %v180
    %466 = vmatprep.subr.mxu0 0.0
    %467 = vmatpush1.msra.mxu0 %v183
    %468 = vmatprep.subr.mxu0 0.0
    %469 = vmatpush1.msra.mxu0 %v186
    %470 = vmatprep.subr.mxu0 0.0
    %471 = vmatpush1.msra.mxu0 %v189
    %472 = vmatprep.subr.mxu0 0.0
    %473 = vmatpush1.msra.mxu0 %v192
    %474 = vmatprep.subr.mxu0 0.0
    %475 = vmatpush1.msra.mxu0 %v195
    %476 = vmatprep.subr.mxu0 0.0
    %477 = vmatpush1.msra.mxu0 %v198
    %478 = vmatprep.subr.mxu0 0.0
    %479 = vmatpush1.msra.mxu0 %v201
    %480 = vmatprep.subr.mxu0 0.0
    %481 = vmatpush1.msra.mxu0 %v204
    %482 = vmatprep.subr.mxu0 0.0
    %483 = vmatpush1.msra.mxu0 %v207
    %484 = vmatprep.subr.mxu0 0.0
    %485 = vmatpush1.msra.mxu0 %v210
    %486 = vmatprep.subr.mxu0 0.0
    %487 = vmatpush1.msra.mxu0 %v213
    %488 = vmatprep.subr.mxu0 0.0
    %489 = vmatpush1.msra.mxu0 %v216
    %490 = vmatprep.subr.mxu0 0.0
    %491 = vmatpush1.msra.mxu0 %v219
    %492 = vmatprep.subr.mxu0 0.0
    %493 = vmatpush1.msra.mxu0 %v222
    %494 = vmatprep.mubr.f32.mxu0 %v125
    %495 = vmatmul.mubr.f32.gmra.mrb[0].mxu0 %v124
    %v496 = vpop.f32.mrb[0].mxu0
    %v497 = vadd.f32 %v284, %v496
    %v498 = vpop.f32.mrb[0].mxu0
    %499 = vdwg.mxu0
    %500 = vmatprep.subr.mxu0 0.0
    %501 = vmatpush1.msra.mxu0 %v225
    %502 = vmatprep.subr.mxu0 0.0
    %503 = vmatpush1.msra.mxu0 %v228
    %504 = vmatprep.subr.mxu0 0.0
    %505 = vmatpush1.msra.mxu0 %v231
    %506 = vmatprep.subr.mxu0 0.0
    %507 = vmatpush1.msra.mxu0 %v234
    %508 = vmatprep.subr.mxu0 0.0
    %509 = vmatpush1.msra.mxu0 %v237
    %510 = vmatprep.subr.mxu0 0.0
    %511 = vmatpush1.msra.mxu0 %v240
    %512 = vmatprep.subr.mxu0 0.0
    %513 = vmatpush1.msra.mxu0 %v243
    %514 = vmatprep.subr.mxu0 0.0
    %515 = vmatpush1.msra.mxu0 %v246
    %516 = vmatprep.subr.mxu0 0.0
    %517 = vmatpush1.msra.mxu0 %v249
    %518 = vmatprep.subr.mxu0 0.0
    %519 = vmatpush1.msra.mxu0 %v252
    %520 = vmatprep.subr.mxu0 0.0
    %521 = vmatpush1.msra.mxu0 %v255
    %522 = vmatprep.subr.mxu0 0.0
    %523 = vmatpush1.msra.mxu0 %v258
    %524 = vmatprep.subr.mxu0 0.0
    %525 = vmatpush1.msra.mxu0 %v261
    %526 = vmatprep.subr.mxu0 0.0
    %527 = vmatpush1.msra.mxu0 %v264
    %528 = vmatprep.subr.mxu0 0.0
    %529 = vmatpush1.msra.mxu0 %v267
    %530 = vmatprep.subr.mxu0 0.0
    %531 = vmatpush1.msra.mxu0 %v270
    %532 = vmatprep.subr.mxu0 0.0
    %533 = vmatpush1.msra.mxu0 0.0
    %534 = vmatprep.subr.mxu0 0.0
    %535 = vmatpush1.msra.mxu0 0.0
    %536 = vmatprep.subr.mxu0 0.0
    %537 = vmatpush1.msra.mxu0 0.0
    %538 = vmatprep.subr.mxu0 0.0
    %539 = vmatpush1.msra.mxu0 0.0
    %540 = vmatprep.subr.mxu0 0.0
    %541 = vmatpush1.msra.mxu0 0.0
    %542 = vmatprep.subr.mxu0 0.0
    %543 = vmatpush1.msra.mxu0 0.0
    %544 = vmatprep.subr.mxu0 0.0
    %545 = vmatpush1.msra.mxu0 0.0
    %546 = vmatprep.subr.mxu0 0.0
    %547 = vmatpush1.msra.mxu0 0.0
    %548 = vmatprep.subr.mxu0 0.0
    %549 = vmatpush1.msra.mxu0 0.0
    %550 = vmatprep.subr.mxu0 0.0
    %551 = vmatpush1.msra.mxu0 0.0
    %552 = vmatprep.subr.mxu0 0.0
    %553 = vmatpush1.msra.mxu0 0.0
    %554 = vmatprep.subr.mxu0 0.0
    %555 = vmatpush1.msra.mxu0 0.0
    %556 = vmatprep.subr.mxu0 0.0
    %557 = vmatpush1.msra.mxu0 0.0
    %558 = vmatprep.subr.mxu0 0.0
    %559 = vmatpush1.msra.mxu0 0.0
    %560 = vmatprep.subr.mxu0 0.0
    %561 = vmatpush1.msra.mxu0 0.0
    %562 = vmatprep.subr.mxu0 0.0
    %563 = vmatpush1.msra.mxu0 0.0
    %564 = vmatprep.mubr.f32.mxu0 0.0
    %565 = vmatmul.mubr.f32.gmra.mrb[0].mxu0 %v126
    %v566 = vpop.f32.mrb[0].mxu0
    %v567 = vadd.f32 %v497, %v566
    %v568 = vpop.f32.mrb[0].mxu0
    %569 = vdwg.mxu0
    %v570 = vmax.f32 %v426, 0.0
    %v571 = vmax.f32 %v428, 0.0
    %v572 = vmax.f32 %v567, 0.0
    %v573 = vld [vmem:[#allocation5] sm:$0xff]
    %v574 = vld [vmem:[#allocation5 + $0x8] sm:$0xff]
    %v575 = vld [vmem:[#allocation5 + $0x10] sm:$0xff]
    %v576 = vld [vmem:[#allocation5 + $0x18] sm:$0xff]
    %v577 = vld [vmem:[#allocation5 + $0x20] sm:$0xff]
    %v578 = vld [vmem:[#allocation5 + $0x28] sm:$0xff]
    %v579 = vld [vmem:[#allocation5 + $0x30] sm:$0xff]
    %v580 = vld [vmem:[#allocation5 + $0x38] sm:$0xff]
    %v581 = vld [vmem:[#allocation5 + $0x40] sm:$0xff]
    %v582 = vld [vmem:[#allocation5 + $0x48] sm:$0xff]
    %v583 = vld [vmem:[#allocation5 + $0x50] sm:$0xff]
    %v584 = vld [vmem:[#allocation5 + $0x58] sm:$0xff]
    %v585 = vld [vmem:[#allocation5 + $0x60] sm:$0xff]
    %v586 = vld [vmem:[#allocation5 + $0x68] sm:$0xff]
    %v587 = vld [vmem:[#allocation5 + $0x70] sm:$0xff]
    %v588 = vld [vmem:[#allocation5 + $0x78] sm:$0xff]
    %v589 = vld [vmem:[#allocation5 + $0x80] sm:$0xff]
    %v590 = vld [vmem:[#allocation5 + $0x88] sm:$0xff]
    %v591 = vld [vmem:[#allocation5 + $0x90] sm:$0xff]
    %v592 = vld [vmem:[#allocation5 + $0x98] sm:$0xff]
    %v593 = vld [vmem:[#allocation5 + $0xa0] sm:$0xff]
    %v594 = vld [vmem:[#allocation5 + $0xa8] sm:$0xff]
    %v595 = vld [vmem:[#allocation5 + $0xb0] sm:$0xff]
    %v596 = vld [vmem:[#allocation5 + $0xb8] sm:$0xff]
    %v597 = vld [vmem:[#allocation5 + $0xc0] sm:$0xff]
    %v598 = vld [vmem:[#allocation5 + $0xc8] sm:$0xff]
    %v599 = vld [vmem:[#allocation5 + $0xd0] sm:$0xff]
    %v600 = vld [vmem:[#allocation5 + $0xd8] sm:$0xff]
    %v601 = vld [vmem:[#allocation5 + $0xe0] sm:$0xff]
    %v602 = vld [vmem:[#allocation5 + $0xe8] sm:$0xff]
    %v603 = vld [vmem:[#allocation5 + $0xf0] sm:$0xff]
    %v604 = vld [vmem:[#allocation5 + $0xf8] sm:$0xff]
    %v605 = vld [vmem:[#allocation5 + $0x100] sm:$0xff]
    %v606 = vld [vmem:[#allocation5 + $0x108] sm:$0xff]
    %v607 = vld [vmem:[#allocation5 + $0x110] sm:$0xff]
    %v608 = vld [vmem:[#allocation5 + $0x118] sm:$0xff]
    %v609 = vld [vmem:[#allocation5 + $0x120] sm:$0xff]
    %v610 = vld [vmem:[#allocation5 + $0x128] sm:$0xff]
    %v611 = vld [vmem:[#allocation5 + $0x130] sm:$0xff]
    %v612 = vld [vmem:[#allocation5 + $0x138] sm:$0xff]
    %v613 = vld [vmem:[#allocation5 + $0x140] sm:$0xff]
    %v614 = vld [vmem:[#allocation5 + $0x148] sm:$0xff]
    %v615 = vld [vmem:[#allocation5 + $0x150] sm:$0xff]
    %v616 = vld [vmem:[#allocation5 + $0x158] sm:$0xff]
    %v617 = vld [vmem:[#allocation5 + $0x160] sm:$0xff]
    %v618 = vld [vmem:[#allocation5 + $0x168] sm:$0xff]
    %v619 = vld [vmem:[#allocation5 + $0x170] sm:$0xff]
    %v620 = vld [vmem:[#allocation5 + $0x178] sm:$0xff]
    %v621 = vld [vmem:[#allocation5 + $0x180] sm:$0xff]
    %v622 = vld [vmem:[#allocation5 + $0x188] sm:$0xff]
    %v623 = vld [vmem:[#allocation5 + $0x190] sm:$0xff]
    %v624 = vld [vmem:[#allocation5 + $0x198] sm:$0xff]
    %v625 = vld [vmem:[#allocation5 + $0x1a0] sm:$0xff]
    %v626 = vld [vmem:[#allocation5 + $0x1a8] sm:$0xff]
    %v627 = vld [vmem:[#allocation5 + $0x1b0] sm:$0xff]
    %v628 = vld [vmem:[#allocation5 + $0x1b8] sm:$0xff]
    %v629 = vld [vmem:[#allocation5 + $0x1c0] sm:$0xff]
    %v630 = vld [vmem:[#allocation5 + $0x1c8] sm:$0xff]
    %v631 = vld [vmem:[#allocation5 + $0x1d0] sm:$0xff]
    %v632 = vld [vmem:[#allocation5 + $0x1d8] sm:$0xff]
    %v633 = vld [vmem:[#allocation5 + $0x1e0] sm:$0xff]
    %v634 = vld [vmem:[#allocation5 + $0x1e8] sm:$0xff]
    %v635 = vld [vmem:[#allocation5 + $0x1f0] sm:$0xff]
    %v636 = vld [vmem:[#allocation5 + $0x1f8] sm:$0xff]
    %v637 = vld [vmem:[#allocation5 + $0x200] sm:$0xff]
    %v638 = vld [vmem:[#allocation5 + $0x208] sm:$0xff]
    %v639 = vld [vmem:[#allocation5 + $0x210] sm:$0xff]
    %v640 = vld [vmem:[#allocation5 + $0x218] sm:$0xff]
    %v641 = vld [vmem:[#allocation5 + $0x220] sm:$0xff]
    %v642 = vld [vmem:[#allocation5 + $0x228] sm:$0xff]
    %v643 = vld [vmem:[#allocation5 + $0x230] sm:$0xff]
    %v644 = vld [vmem:[#allocation5 + $0x238] sm:$0xff]
    %v645 = vld [vmem:[#allocation5 + $0x240] sm:$0xff]
    %v646 = vld [vmem:[#allocation5 + $0x248] sm:$0xff]
    %v647 = vld [vmem:[#allocation5 + $0x250] sm:$0xff]
    %v648 = vld [vmem:[#allocation5 + $0x258] sm:$0xff]
    %v649 = vld [vmem:[#allocation5 + $0x260] sm:$0xff]
    %v650 = vld [vmem:[#allocation5 + $0x268] sm:$0xff]
    %v651 = vld [vmem:[#allocation5 + $0x270] sm:$0xff]
    %v652 = vld [vmem:[#allocation5 + $0x278] sm:$0xff]
    %v653 = vld [vmem:[#allocation5 + $0x280] sm:$0xff]
    %v654 = vld [vmem:[#allocation5 + $0x288] sm:$0xff]
    %v655 = vld [vmem:[#allocation5 + $0x290] sm:$0xff]
    %v656 = vld [vmem:[#allocation5 + $0x298] sm:$0xff]
    %v657 = vld [vmem:[#allocation5 + $0x2a0] sm:$0xff]
    %v658 = vld [vmem:[#allocation5 + $0x2a8] sm:$0xff]
    %v659 = vld [vmem:[#allocation5 + $0x2b0] sm:$0xff]
    %v660 = vld [vmem:[#allocation5 + $0x2b8] sm:$0xff]
    %v661 = vld [vmem:[#allocation5 + $0x2c0] sm:$0xff]
    %v662 = vld [vmem:[#allocation5 + $0x2c8] sm:$0xff]
    %v663 = vld [vmem:[#allocation5 + $0x2d0] sm:$0xff]
    %v664 = vld [vmem:[#allocation5 + $0x2d8] sm:$0xff]
    %v665 = vld [vmem:[#allocation5 + $0x2e0] sm:$0xff]
    %v666 = vld [vmem:[#allocation5 + $0x2e8] sm:$0xff]
    %v667 = vld [vmem:[#allocation5 + $0x2f0] sm:$0xff]
    %v668 = vld [vmem:[#allocation5 + $0x2f8] sm:$0xff]
    %v669 = vld [vmem:[#allocation5 + $0x300] sm:$0xff]
    %v670 = vld [vmem:[#allocation5 + $0x308] sm:$0xff]
    %v671 = vld [vmem:[#allocation5 + $0x310] sm:$0xff]
    %v672 = vld [vmem:[#allocation5 + $0x318] sm:$0xff]
    %v673 = vld [vmem:[#allocation5 + $0x320] sm:$0xff]
    %v674 = vld [vmem:[#allocation5 + $0x328] sm:$0xff]
    %v675 = vld [vmem:[#allocation5 + $0x330] sm:$0xff]
    %v676 = vld [vmem:[#allocation5 + $0x338] sm:$0xff]
    %v677 = vld [vmem:[#allocation5 + $0x340] sm:$0xff]
    %v678 = vld [vmem:[#allocation5 + $0x348] sm:$0xff]
    %v679 = vld [vmem:[#allocation5 + $0x350] sm:$0xff]
    %v680 = vld [vmem:[#allocation5 + $0x358] sm:$0xff]
    %v681 = vld [vmem:[#allocation5 + $0x360] sm:$0xff]
    %v682 = vld [vmem:[#allocation5 + $0x368] sm:$0xff]
    %v683 = vld [vmem:[#allocation5 + $0x370] sm:$0xff]
    %v684 = vld [vmem:[#allocation5 + $0x378] sm:$0xff]
    %v685 = vld [vmem:[#allocation5 + $0x380] sm:$0xff]
    %v686 = vld [vmem:[#allocation5 + $0x388] sm:$0xff]
    %v687 = vld [vmem:[#allocation5 + $0x390] sm:$0xff]
    %v688 = vld [vmem:[#allocation5 + $0x398] sm:$0xff]
    %v689 = vld [vmem:[#allocation5 + $0x3a0] sm:$0xff]
    %v690 = vld [vmem:[#allocation5 + $0x3a8] sm:$0xff]
    %v691 = vld [vmem:[#allocation5 + $0x3b0] sm:$0xff]
    %v692 = vld [vmem:[#allocation5 + $0x3b8] sm:$0xff]
    %v693 = vld [vmem:[#allocation5 + $0x3c0] sm:$0xff]
    %v694 = vld [vmem:[#allocation5 + $0x3c8] sm:$0xff]
    %v695 = vld [vmem:[#allocation5 + $0x3d0] sm:$0xff]
    %v696 = vld [vmem:[#allocation5 + $0x3d8] sm:$0xff]
    %v697 = vld [vmem:[#allocation5 + $0x3e0] sm:$0xff]
    %v698 = vld [vmem:[#allocation5 + $0x3e8] sm:$0xff]
    %v699 = vld [vmem:[#allocation5 + $0x3f0] sm:$0xff]
    %v700 = vld [vmem:[#allocation5 + $0x3f8] sm:$0xff]
    %v701 = vld [vmem:[#allocation5 + $0x400] sm:$0xff]
    %v702 = vld [vmem:[#allocation5 + $0x408] sm:$0xff]
    %v703 = vld [vmem:[#allocation5 + $0x410] sm:$0xff]
    %v704 = vld [vmem:[#allocation5 + $0x418] sm:$0xff]
    %v705 = vld [vmem:[#allocation5 + $0x420] sm:$0xff]
    %v706 = vld [vmem:[#allocation5 + $0x428] sm:$0xff]
    %v707 = vld [vmem:[#allocation5 + $0x430] sm:$0xff]
    %v708 = vld [vmem:[#allocation5 + $0x438] sm:$0xff]
    %v709 = vld [vmem:[#allocation5 + $0x440] sm:$0xff]
    %v710 = vld [vmem:[#allocation5 + $0x448] sm:$0xff]
    %v711 = vld [vmem:[#allocation5 + $0x450] sm:$0xff]
    %v712 = vld [vmem:[#allocation5 + $0x458] sm:$0xff]
    %v713 = vld [vmem:[#allocation5 + $0x460] sm:$0xff]
    %v714 = vld [vmem:[#allocation5 + $0x468] sm:$0xff]
    %v715 = vld [vmem:[#allocation5 + $0x470] sm:$0xff]
    %v716 = vld [vmem:[#allocation5 + $0x478] sm:$0xff]
    %v717 = vld [vmem:[%s4] sm:$0x7]
    %v719 = vlaneseq
    %v720 = vshrl.u32 %v719, 7
    %v721 = vsub.s32 0, %v720
    %v722 = vrot.slane %v717, %v721
    %v723 = vlaneseq
    %v724 = vshrl.u32 %v723, 7
    %v725 = vsub.s32 1, %v724
    %v726 = vrot.slane %v717, %v725
    %v727 = vlaneseq
    %v728 = vshrl.u32 %v727, 7
    %v729 = vsub.s32 2, %v728
    %v730 = vrot.slane %v717, %v729
    %734 = vmatprep.subr.mxu0 %v574
    %735 = vmatpush1.msra.mxu0 %v573
    %736 = vmatprep.subr.mxu0 %v577
    %737 = vmatpush1.msra.mxu0 %v576
    %738 = vmatprep.subr.mxu0 %v580
    %739 = vmatpush1.msra.mxu0 %v579
    %740 = vmatprep.subr.mxu0 %v583
    %741 = vmatpush1.msra.mxu0 %v582
    %742 = vmatprep.subr.mxu0 %v586
    %743 = vmatpush1.msra.mxu0 %v585
    %744 = vmatprep.subr.mxu0 %v589
    %745 = vmatpush1.msra.mxu0 %v588
    %746 = vmatprep.subr.mxu0 %v592
    %747 = vmatpush1.msra.mxu0 %v591
    %748 = vmatprep.subr.mxu0 %v595
    %749 = vmatpush1.msra.mxu0 %v594
    %750 = vmatprep.subr.mxu0 %v598
    %751 = vmatpush1.msra.mxu0 %v597
    %752 = vmatprep.subr.mxu0 %v601
    %753 = vmatpush1.msra.mxu0 %v600
    %754 = vmatprep.subr.mxu0 %v604
    %755 = vmatpush1.msra.mxu0 %v603
    %756 = vmatprep.subr.mxu0 %v607
    %757 = vmatpush1.msra.mxu0 %v606
    %758 = vmatprep.subr.mxu0 %v610
    %759 = vmatpush1.msra.mxu0 %v609
    %760 = vmatprep.subr.mxu0 %v613
    %761 = vmatpush1.msra.mxu0 %v612
    %762 = vmatprep.subr.mxu0 %v616
    %763 = vmatpush1.msra.mxu0 %v615
    %764 = vmatprep.subr.mxu0 %v619
    %765 = vmatpush1.msra.mxu0 %v618
    %766 = vmatprep.subr.mxu0 %v622
    %767 = vmatpush1.msra.mxu0 %v621
    %768 = vmatprep.subr.mxu0 %v625
    %769 = vmatpush1.msra.mxu0 %v624
    %770 = vmatprep.subr.mxu0 %v628
    %771 = vmatpush1.msra.mxu0 %v627
    %772 = vmatprep.subr.mxu0 %v631
    %773 = vmatpush1.msra.mxu0 %v630
    %774 = vmatprep.subr.mxu0 %v634
    %775 = vmatpush1.msra.mxu0 %v633
    %776 = vmatprep.subr.mxu0 %v637
    %777 = vmatpush1.msra.mxu0 %v636
    %778 = vmatprep.subr.mxu0 %v640
    %779 = vmatpush1.msra.mxu0 %v639
    %780 = vmatprep.subr.mxu0 %v643
    %781 = vmatpush1.msra.mxu0 %v642
    %782 = vmatprep.subr.mxu0 %v646
    %783 = vmatpush1.msra.mxu0 %v645
    %784 = vmatprep.subr.mxu0 %v649
    %785 = vmatpush1.msra.mxu0 %v648
    %786 = vmatprep.subr.mxu0 %v652
    %787 = vmatpush1.msra.mxu0 %v651
    %788 = vmatprep.subr.mxu0 %v655
    %789 = vmatpush1.msra.mxu0 %v654
    %790 = vmatprep.subr.mxu0 %v658
    %791 = vmatpush1.msra.mxu0 %v657
    %792 = vmatprep.subr.mxu0 %v661
    %793 = vmatpush1.msra.mxu0 %v660
    %794 = vmatprep.subr.mxu0 %v664
    %795 = vmatpush1.msra.mxu0 %v663
    %796 = vmatprep.subr.mxu0 %v667
    %797 = vmatpush1.msra.mxu0 %v666
    %798 = vmatprep.mubr.f32.mxu0 %v571
    %799 = vmatmul.mubr.f32.gmra.mrb[0].mxu0 %v570
    %v800 = vpop.f32.mrb[0].mxu0
    %v801 = vadd.f32 %v722, %v800
    %v802 = vpop.f32.mrb[0].mxu0
    %v803 = vadd.f32 %v726, %v802
    %804 = vdwg.mxu0
    %805 = vmatprep.subr.mxu0 %v670
    %806 = vmatpush1.msra.mxu0 %v669
    %807 = vmatprep.subr.mxu0 %v673
    %808 = vmatpush1.msra.mxu0 %v672
    %809 = vmatprep.subr.mxu0 %v676
    %810 = vmatpush1.msra.mxu0 %v675
    %811 = vmatprep.subr.mxu0 %v679
    %812 = vmatpush1.msra.mxu0 %v678
    %813 = vmatprep.subr.mxu0 %v682
    %814 = vmatpush1.msra.mxu0 %v681
    %815 = vmatprep.subr.mxu0 %v685
    %816 = vmatpush1.msra.mxu0 %v684
    %817 = vmatprep.subr.mxu0 %v688
    %818 = vmatpush1.msra.mxu0 %v687
    %819 = vmatprep.subr.mxu0 %v691
    %820 = vmatpush1.msra.mxu0 %v690
    %821 = vmatprep.subr.mxu0 %v694
    %822 = vmatpush1.msra.mxu0 %v693
    %823 = vmatprep.subr.mxu0 %v697
    %824 = vmatpush1.msra.mxu0 %v696
    %825 = vmatprep.subr.mxu0 %v700
    %826 = vmatpush1.msra.mxu0 %v699
    %827 = vmatprep.subr.mxu0 %v703
    %828 = vmatpush1.msra.mxu0 %v702
    %829 = vmatprep.subr.mxu0 %v706
    %830 = vmatpush1.msra.mxu0 %v705
    %831 = vmatprep.subr.mxu0 %v709
    %832 = vmatpush1.msra.mxu0 %v708
    %833 = vmatprep.subr.mxu0 %v712
    %834 = vmatpush1.msra.mxu0 %v711
    %835 = vmatprep.subr.mxu0 %v715
    %836 = vmatpush1.msra.mxu0 %v714
    %837 = vmatprep.subr.mxu0 0.0
    %838 = vmatpush1.msra.mxu0 0.0
    %839 = vmatprep.subr.mxu0 0.0
    %840 = vmatpush1.msra.mxu0 0.0
    %841 = vmatprep.subr.mxu0 0.0
    %842 = vmatpush1.msra.mxu0 0.0
    %843 = vmatprep.subr.mxu0 0.0
    %844 = vmatpush1.msra.mxu0 0.0
    %845 = vmatprep.subr.mxu0 0.0
    %846 = vmatpush1.msra.mxu0 0.0
    %847 = vmatprep.subr.mxu0 0.0
    %848 = vmatpush1.msra.mxu0 0.0
    %849 = vmatprep.subr.mxu0 0.0
    %850 = vmatpush1.msra.mxu0 0.0
    %851 = vmatprep.subr.mxu0 0.0
    %852 = vmatpush1.msra.mxu0 0.0
    %853 = vmatprep.subr.mxu0 0.0
    %854 = vmatpush1.msra.mxu0 0.0
    %855 = vmatprep.subr.mxu0 0.0
    %856 = vmatpush1.msra.mxu0 0.0
    %857 = vmatprep.subr.mxu0 0.0
    %858 = vmatpush1.msra.mxu0 0.0
    %859 = vmatprep.subr.mxu0 0.0
    %860 = vmatpush1.msra.mxu0 0.0
    %861 = vmatprep.subr.mxu0 0.0
    %862 = vmatpush1.msra.mxu0 0.0
    %863 = vmatprep.subr.mxu0 0.0
    %864 = vmatpush1.msra.mxu0 0.0
    %865 = vmatprep.subr.mxu0 0.0
    %866 = vmatpush1.msra.mxu0 0.0
    %867 = vmatprep.subr.mxu0 0.0
    %868 = vmatpush1.msra.mxu0 0.0
    %869 = vmatprep.mubr.f32.mxu0 0.0
    %870 = vmatmul.mubr.f32.gmra.mrb[0].mxu0 %v572
    %v871 = vpop.f32.mrb[0].mxu0
    %v872 = vadd.f32 %v801, %v871
    %v873 = vpop.f32.mrb[0].mxu0
    %v874 = vadd.f32 %v803, %v873
    %875 = vdwg.mxu0
    %876 = vmatprep.subr.mxu0 0.0
    %877 = vmatpush1.msra.mxu0 %v575
    %878 = vmatprep.subr.mxu0 0.0
    %879 = vmatpush1.msra.mxu0 %v578
    %880 = vmatprep.subr.mxu0 0.0
    %881 = vmatpush1.msra.mxu0 %v581
    %882 = vmatprep.subr.mxu0 0.0
    %883 = vmatpush1.msra.mxu0 %v584
    %884 = vmatprep.subr.mxu0 0.0
    %885 = vmatpush1.msra.mxu0 %v587
    %886 = vmatprep.subr.mxu0 0.0
    %887 = vmatpush1.msra.mxu0 %v590
    %888 = vmatprep.subr.mxu0 0.0
    %889 = vmatpush1.msra.mxu0 %v593
    %890 = vmatprep.subr.mxu0 0.0
    %891 = vmatpush1.msra.mxu0 %v596
    %892 = vmatprep.subr.mxu0 0.0
    %893 = vmatpush1.msra.mxu0 %v599
    %894 = vmatprep.subr.mxu0 0.0
    %895 = vmatpush1.msra.mxu0 %v602
    %896 = vmatprep.subr.mxu0 0.0
    %897 = vmatpush1.msra.mxu0 %v605
    %898 = vmatprep.subr.mxu0 0.0
    %899 = vmatpush1.msra.mxu0 %v608
    %900 = vmatprep.subr.mxu0 0.0
    %901 = vmatpush1.msra.mxu0 %v611
    %902 = vmatprep.subr.mxu0 0.0
    %903 = vmatpush1.msra.mxu0 %v614
    %904 = vmatprep.subr.mxu0 0.0
    %905 = vmatpush1.msra.mxu0 %v617
    %906 = vmatprep.subr.mxu0 0.0
    %907 = vmatpush1.msra.mxu0 %v620
    %908 = vmatprep.subr.mxu0 0.0
    %909 = vmatpush1.msra.mxu0 %v623
    %910 = vmatprep.subr.mxu0 0.0
    %911 = vmatpush1.msra.mxu0 %v626
    %912 = vmatprep.subr.mxu0 0.0
    %913 = vmatpush1.msra.mxu0 %v629
    %914 = vmatprep.subr.mxu0 0.0
    %915 = vmatpush1.msra.mxu0 %v632
    %916 = vmatprep.subr.mxu0 0.0
    %917 = vmatpush1.msra.mxu0 %v635
    %918 = vmatprep.subr.mxu0 0.0
    %919 = vmatpush1.msra.mxu0 %v638
    %920 = vmatprep.subr.mxu0 0.0
    %921 = vmatpush1.msra.mxu0 %v641
    %922 = vmatprep.subr.mxu0 0.0
    %923 = vmatpush1.msra.mxu0 %v644
    %924 = vmatprep.subr.mxu0 0.0
    %925 = vmatpush1.msra.mxu0 %v647
    %926 = vmatprep.subr.mxu0 0.0
    %927 = vmatpush1.msra.mxu0 %v650
    %928 = vmatprep.subr.mxu0 0.0
    %929 = vmatpush1.msra.mxu0 %v653
    %930 = vmatprep.subr.mxu0 0.0
    %931 = vmatpush1.msra.mxu0 %v656
    %932 = vmatprep.subr.mxu0 0.0
    %933 = vmatpush1.msra.mxu0 %v659
    %934 = vmatprep.subr.mxu0 0.0
    %935 = vmatpush1.msra.mxu0 %v662
    %936 = vmatprep.subr.mxu0 0.0
    %937 = vmatpush1.msra.mxu0 %v665
    %938 = vmatprep.subr.mxu0 0.0
    %939 = vmatpush1.msra.mxu0 %v668
    %940 = vmatprep.mubr.f32.mxu0 %v571
    %941 = vmatmul.mubr.f32.gmra.mrb[0].mxu0 %v570
    %v942 = vpop.f32.mrb[0].mxu0
    %v943 = vadd.f32 %v730, %v942
    %v944 = vpop.f32.mrb[0].mxu0
    %945 = vdwg.mxu0
    %946 = vmatprep.subr.mxu0 0.0
    %947 = vmatpush1.msra.mxu0 %v671
    %948 = vmatprep.subr.mxu0 0.0
    %949 = vmatpush1.msra.mxu0 %v674
    %950 = vmatprep.subr.mxu0 0.0
    %951 = vmatpush1.msra.mxu0 %v677
    %952 = vmatprep.subr.mxu0 0.0
    %953 = vmatpush1.msra.mxu0 %v680
    %954 = vmatprep.subr.mxu0 0.0
    %955 = vmatpush1.msra.mxu0 %v683
    %956 = vmatprep.subr.mxu0 0.0
    %957 = vmatpush1.msra.mxu0 %v686
    %958 = vmatprep.subr.mxu0 0.0
    %959 = vmatpush1.msra.mxu0 %v689
    %960 = vmatprep.subr.mxu0 0.0
    %961 = vmatpush1.msra.mxu0 %v692
    %962 = vmatprep.subr.mxu0 0.0
    %963 = vmatpush1.msra.mxu0 %v695
    %964 = vmatprep.subr.mxu0 0.0
    %965 = vmatpush1.msra.mxu0 %v698
    %966 = vmatprep.subr.mxu0 0.0
    %967 = vmatpush1.msra.mxu0 %v701
    %968 = vmatprep.subr.mxu0 0.0
    %969 = vmatpush1.msra.mxu0 %v704
    %970 = vmatprep.subr.mxu0 0.0
    %971 = vmatpush1.msra.mxu0 %v707
    %972 = vmatprep.subr.mxu0 0.0
    %973 = vmatpush1.msra.mxu0 %v710
    %974 = vmatprep.subr.mxu0 0.0
    %975 = vmatpush1.msra.mxu0 %v713
    %976 = vmatprep.subr.mxu0 0.0
    %977 = vmatpush1.msra.mxu0 %v716
    %978 = vmatprep.subr.mxu0 0.0
    %979 = vmatpush1.msra.mxu0 0.0
    %980 = vmatprep.subr.mxu0 0.0
    %981 = vmatpush1.msra.mxu0 0.0
    %982 = vmatprep.subr.mxu0 0.0
    %983 = vmatpush1.msra.mxu0 0.0
    %984 = vmatprep.subr.mxu0 0.0
    %985 = vmatpush1.msra.mxu0 0.0
    %986 = vmatprep.subr.mxu0 0.0
    %987 = vmatpush1.msra.mxu0 0.0
    %988 = vmatprep.subr.mxu0 0.0
    %989 = vmatpush1.msra.mxu0 0.0
    %990 = vmatprep.subr.mxu0 0.0
    %991 = vmatpush1.msra.mxu0 0.0
    %992 = vmatprep.subr.mxu0 0.0
    %993 = vmatpush1.msra.mxu0 0.0
    %994 = vmatprep.subr.mxu0 0.0
    %995 = vmatpush1.msra.mxu0 0.0
    %996 = vmatprep.subr.mxu0 0.0
    %997 = vmatpush1.msra.mxu0 0.0
    %998 = vmatprep.subr.mxu0 0.0
    %999 = vmatpush1.msra.mxu0 0.0
    %1000 = vmatprep.subr.mxu0 0.0
    %1001 = vmatpush1.msra.mxu0 0.0
    %1002 = vmatprep.subr.mxu0 0.0
    %1003 = vmatpush1.msra.mxu0 0.0
    %1004 = vmatprep.subr.mxu0 0.0
    %1005 = vmatpush1.msra.mxu0 0.0
    %1006 = vmatprep.subr.mxu0 0.0
    %1007 = vmatpush1.msra.mxu0 0.0
    %1008 = vmatprep.subr.mxu0 0.0
    %1009 = vmatpush1.msra.mxu0 0.0
    %1010 = vmatprep.mubr.f32.mxu0 0.0
    %1011 = vmatmul.mubr.f32.gmra.mrb[0].mxu0 %v572
    %v1012 = vpop.f32.mrb[0].mxu0
    %v1013 = vadd.f32 %v943, %v1012
    %v1014 = vpop.f32.mrb[0].mxu0
    %1015 = vdwg.mxu0
    %v1016 = vmax.f32 %v872, 0.0
    %v1017 = vmax.f32 %v874, 0.0
    %v1018 = vmax.f32 %v1013, 0.0
    %v1019 = vld [vmem:[#allocation7] sm:$0xff]
    %v1020 = vld [vmem:[#allocation7 + $0x8] sm:$0xff]
    %v1021 = vld [vmem:[#allocation7 + $0x10] sm:$0xff]
    %v1022 = vld [vmem:[#allocation7 + $0x18] sm:$0xff]
    %v1023 = vld [vmem:[#allocation7 + $0x20] sm:$0xff]
    %v1024 = vld [vmem:[#allocation7 + $0x28] sm:$0xff]
    %v1025 = vld [vmem:[#allocation7 + $0x30] sm:$0xff]
    %v1026 = vld [vmem:[#allocation7 + $0x38] sm:$0xff]
    %v1027 = vld [vmem:[#allocation7 + $0x40] sm:$0xff]
    %v1028 = vld [vmem:[#allocation7 + $0x48] sm:$0xff]
    %v1029 = vld [vmem:[#allocation7 + $0x50] sm:$0xff]
    %v1030 = vld [vmem:[#allocation7 + $0x58] sm:$0xff]
    %v1031 = vld [vmem:[#allocation7 + $0x60] sm:$0xff]
    %v1032 = vld [vmem:[#allocation7 + $0x68] sm:$0xff]
    %v1033 = vld [vmem:[#allocation7 + $0x70] sm:$0xff]
    %v1034 = vld [vmem:[#allocation7 + $0x78] sm:$0xff]
    %v1035 = vld [vmem:[#allocation7 + $0x80] sm:$0xff]
    %v1036 = vld [vmem:[#allocation7 + $0x88] sm:$0xff]
    %v1037 = vld [vmem:[#allocation7 + $0x90] sm:$0xff]
    %v1038 = vld [vmem:[#allocation7 + $0x98] sm:$0xff]
    %v1039 = vld [vmem:[#allocation7 + $0xa0] sm:$0xff]
    %v1040 = vld [vmem:[#allocation7 + $0xa8] sm:$0xff]
    %v1041 = vld [vmem:[#allocation7 + $0xb0] sm:$0xff]
    %v1042 = vld [vmem:[#allocation7 + $0xb8] sm:$0xff]
    %v1043 = vld [vmem:[#allocation7 + $0xc0] sm:$0xff]
    %v1044 = vld [vmem:[#allocation7 + $0xc8] sm:$0xff]
    %v1045 = vld [vmem:[#allocation7 + $0xd0] sm:$0xff]
    %v1046 = vld [vmem:[#allocation7 + $0xd8] sm:$0xff]
    %v1047 = vld [vmem:[#allocation7 + $0xe0] sm:$0xff]
    %v1048 = vld [vmem:[#allocation7 + $0xe8] sm:$0xff]
    %v1049 = vld [vmem:[#allocation7 + $0xf0] sm:$0xff]
    %v1050 = vld [vmem:[#allocation7 + $0xf8] sm:$0xff]
    %v1051 = vld [vmem:[#allocation7 + $0x100] sm:$0xff]
    %v1052 = vld [vmem:[#allocation7 + $0x108] sm:$0xff]
    %v1053 = vld [vmem:[#allocation7 + $0x110] sm:$0xff]
    %v1054 = vld [vmem:[#allocation7 + $0x118] sm:$0xff]
    %v1055 = vld [vmem:[#allocation7 + $0x120] sm:$0xff]
    %v1056 = vld [vmem:[#allocation7 + $0x128] sm:$0xff]
    %v1057 = vld [vmem:[#allocation7 + $0x130] sm:$0xff]
    %v1058 = vld [vmem:[#allocation7 + $0x138] sm:$0xff]
    %v1059 = vld [vmem:[#allocation7 + $0x140] sm:$0xff]
    %v1060 = vld [vmem:[#allocation7 + $0x148] sm:$0xff]
    %v1061 = vld [vmem:[#allocation7 + $0x150] sm:$0xff]
    %v1062 = vld [vmem:[#allocation7 + $0x158] sm:$0xff]
    %v1063 = vld [vmem:[#allocation7 + $0x160] sm:$0xff]
    %v1064 = vld [vmem:[#allocation7 + $0x168] sm:$0xff]
    %v1065 = vld [vmem:[#allocation7 + $0x170] sm:$0xff]
    %v1066 = vld [vmem:[#allocation7 + $0x178] sm:$0xff]
    %v1067 = vld [vmem:[#allocation7 + $0x180] sm:$0xff]
    %v1068 = vld [vmem:[#allocation7 + $0x188] sm:$0xff]
    %v1069 = vld [vmem:[#allocation7 + $0x190] sm:$0xff]
    %v1070 = vld [vmem:[#allocation7 + $0x198] sm:$0xff]
    %v1071 = vld [vmem:[#allocation7 + $0x1a0] sm:$0xff]
    %v1072 = vld [vmem:[#allocation7 + $0x1a8] sm:$0xff]
    %v1073 = vld [vmem:[#allocation7 + $0x1b0] sm:$0xff]
    %v1074 = vld [vmem:[#allocation7 + $0x1b8] sm:$0xff]
    %v1075 = vld [vmem:[#allocation7 + $0x1c0] sm:$0xff]
    %v1076 = vld [vmem:[#allocation7 + $0x1c8] sm:$0xff]
    %v1077 = vld [vmem:[#allocation7 + $0x1d0] sm:$0xff]
    %v1078 = vld [vmem:[#allocation7 + $0x1d8] sm:$0xff]
    %v1079 = vld [vmem:[#allocation7 + $0x1e0] sm:$0xff]
    %v1080 = vld [vmem:[#allocation7 + $0x1e8] sm:$0xff]
    %v1081 = vld [vmem:[#allocation7 + $0x1f0] sm:$0xff]
    %v1082 = vld [vmem:[#allocation7 + $0x1f8] sm:$0xff]
    %v1083 = vld [vmem:[#allocation7 + $0x200] sm:$0xff]
    %v1084 = vld [vmem:[#allocation7 + $0x208] sm:$0xff]
    %v1085 = vld [vmem:[#allocation7 + $0x210] sm:$0xff]
    %v1086 = vld [vmem:[#allocation7 + $0x218] sm:$0xff]
    %v1087 = vld [vmem:[#allocation7 + $0x220] sm:$0xff]
    %v1088 = vld [vmem:[#allocation7 + $0x228] sm:$0xff]
    %v1089 = vld [vmem:[#allocation7 + $0x230] sm:$0xff]
    %v1090 = vld [vmem:[#allocation7 + $0x238] sm:$0xff]
    %v1091 = vld [vmem:[#allocation7 + $0x240] sm:$0xff]
    %v1092 = vld [vmem:[#allocation7 + $0x248] sm:$0xff]
    %v1093 = vld [vmem:[#allocation7 + $0x250] sm:$0xff]
    %v1094 = vld [vmem:[#allocation7 + $0x258] sm:$0xff]
    %v1095 = vld [vmem:[#allocation7 + $0x260] sm:$0xff]
    %v1096 = vld [vmem:[#allocation7 + $0x268] sm:$0xff]
    %v1097 = vld [vmem:[#allocation7 + $0x270] sm:$0xff]
    %v1098 = vld [vmem:[#allocation7 + $0x278] sm:$0xff]
    %v1099 = vld [vmem:[#allocation7 + $0x280] sm:$0xff]
    %v1100 = vld [vmem:[#allocation7 + $0x288] sm:$0xff]
    %v1101 = vld [vmem:[#allocation7 + $0x290] sm:$0xff]
    %v1102 = vld [vmem:[#allocation7 + $0x298] sm:$0xff]
    %v1103 = vld [vmem:[#allocation7 + $0x2a0] sm:$0xff]
    %v1104 = vld [vmem:[#allocation7 + $0x2a8] sm:$0xff]
    %v1105 = vld [vmem:[#allocation7 + $0x2b0] sm:$0xff]
    %v1106 = vld [vmem:[#allocation7 + $0x2b8] sm:$0xff]
    %v1107 = vld [vmem:[#allocation7 + $0x2c0] sm:$0xff]
    %v1108 = vld [vmem:[#allocation7 + $0x2c8] sm:$0xff]
    %v1109 = vld [vmem:[#allocation7 + $0x2d0] sm:$0xff]
    %v1110 = vld [vmem:[#allocation7 + $0x2d8] sm:$0xff]
    %v1111 = vld [vmem:[#allocation7 + $0x2e0] sm:$0xff]
    %v1112 = vld [vmem:[#allocation7 + $0x2e8] sm:$0xff]
    %v1113 = vld [vmem:[#allocation7 + $0x2f0] sm:$0xff]
    %v1114 = vld [vmem:[#allocation7 + $0x2f8] sm:$0xff]
    %v1115 = vld [vmem:[%s6] sm:$0x3]
    %v1117 = vlaneseq
    %v1118 = vshrl.u32 %v1117, 7
    %v1119 = vsub.s32 0, %v1118
    %v1120 = vrot.slane %v1115, %v1119
    %v1121 = vlaneseq
    %v1122 = vshrl.u32 %v1121, 7
    %v1123 = vsub.s32 1, %v1122
    %v1124 = vrot.slane %v1115, %v1123
    %1127 = vmatprep.subr.mxu0 %v1020
    %1128 = vmatpush1.msra.mxu0 %v1019
    %1129 = vmatprep.subr.mxu0 %v1022
    %1130 = vmatpush1.msra.mxu0 %v1021
    %1131 = vmatprep.subr.mxu0 %v1024
    %1132 = vmatpush1.msra.mxu0 %v1023
    %1133 = vmatprep.subr.mxu0 %v1026
    %1134 = vmatpush1.msra.mxu0 %v1025
    %1135 = vmatprep.subr.mxu0 %v1028
    %1136 = vmatpush1.msra.mxu0 %v1027
    %1137 = vmatprep.subr.mxu0 %v1030
    %1138 = vmatpush1.msra.mxu0 %v1029
    %1139 = vmatprep.subr.mxu0 %v1032
    %1140 = vmatpush1.msra.mxu0 %v1031
    %1141 = vmatprep.subr.mxu0 %v1034
    %1142 = vmatpush1.msra.mxu0 %v1033
    %1143 = vmatprep.subr.mxu0 %v1036
    %1144 = vmatpush1.msra.mxu0 %v1035
    %1145 = vmatprep.subr.mxu0 %v1038
    %1146 = vmatpush1.msra.mxu0 %v1037
    %1147 = vmatprep.subr.mxu0 %v1040
    %1148 = vmatpush1.msra.mxu0 %v1039
    %1149 = vmatprep.subr.mxu0 %v1042
    %1150 = vmatpush1.msra.mxu0 %v1041
    %1151 = vmatprep.subr.mxu0 %v1044
    %1152 = vmatpush1.msra.mxu0 %v1043
    %1153 = vmatprep.subr.mxu0 %v1046
    %1154 = vmatpush1.msra.mxu0 %v1045
    %1155 = vmatprep.subr.mxu0 %v1048
    %1156 = vmatpush1.msra.mxu0 %v1047
    %1157 = vmatprep.subr.mxu0 %v1050
    %1158 = vmatpush1.msra.mxu0 %v1049
    %1159 = vmatprep.subr.mxu0 %v1052
    %1160 = vmatpush1.msra.mxu0 %v1051
    %1161 = vmatprep.subr.mxu0 %v1054
    %1162 = vmatpush1.msra.mxu0 %v1053
    %1163 = vmatprep.subr.mxu0 %v1056
    %1164 = vmatpush1.msra.mxu0 %v1055
    %1165 = vmatprep.subr.mxu0 %v1058
    %1166 = vmatpush1.msra.mxu0 %v1057
    %1167 = vmatprep.subr.mxu0 %v1060
    %1168 = vmatpush1.msra.mxu0 %v1059
    %1169 = vmatprep.subr.mxu0 %v1062
    %1170 = vmatpush1.msra.mxu0 %v1061
    %1171 = vmatprep.subr.mxu0 %v1064
    %1172 = vmatpush1.msra.mxu0 %v1063
    %1173 = vmatprep.subr.mxu0 %v1066
    %1174 = vmatpush1.msra.mxu0 %v1065
    %1175 = vmatprep.subr.mxu0 %v1068
    %1176 = vmatpush1.msra.mxu0 %v1067
    %1177 = vmatprep.subr.mxu0 %v1070
    %1178 = vmatpush1.msra.mxu0 %v1069
    %1179 = vmatprep.subr.mxu0 %v1072
    %1180 = vmatpush1.msra.mxu0 %v1071
    %1181 = vmatprep.subr.mxu0 %v1074
    %1182 = vmatpush1.msra.mxu0 %v1073
    %1183 = vmatprep.subr.mxu0 %v1076
    %1184 = vmatpush1.msra.mxu0 %v1075
    %1185 = vmatprep.subr.mxu0 %v1078
    %1186 = vmatpush1.msra.mxu0 %v1077
    %1187 = vmatprep.subr.mxu0 %v1080
    %1188 = vmatpush1.msra.mxu0 %v1079
    %1189 = vmatprep.subr.mxu0 %v1082
    %1190 = vmatpush1.msra.mxu0 %v1081
    %1191 = vmatprep.mubr.f32.mxu0 %v1017
    %1192 = vmatmul.mubr.f32.gmra.mrb[0].mxu0 %v1016
    %v1193 = vpop.f32.mrb[0].mxu0
    %v1194 = vadd.f32 %v1120, %v1193
    %v1195 = vpop.f32.mrb[0].mxu0
    %v1196 = vadd.f32 %v1124, %v1195
    %1197 = vdwg.mxu0
    %1198 = vmatprep.subr.mxu0 %v1084
    %1199 = vmatpush1.msra.mxu0 %v1083
    %1200 = vmatprep.subr.mxu0 %v1086
    %1201 = vmatpush1.msra.mxu0 %v1085
    %1202 = vmatprep.subr.mxu0 %v1088
    %1203 = vmatpush1.msra.mxu0 %v1087
    %1204 = vmatprep.subr.mxu0 %v1090
    %1205 = vmatpush1.msra.mxu0 %v1089
    %1206 = vmatprep.subr.mxu0 %v1092
    %1207 = vmatpush1.msra.mxu0 %v1091
    %1208 = vmatprep.subr.mxu0 %v1094
    %1209 = vmatpush1.msra.mxu0 %v1093
    %1210 = vmatprep.subr.mxu0 %v1096
    %1211 = vmatpush1.msra.mxu0 %v1095
    %1212 = vmatprep.subr.mxu0 %v1098
    %1213 = vmatpush1.msra.mxu0 %v1097
    %1214 = vmatprep.subr.mxu0 %v1100
    %1215 = vmatpush1.msra.mxu0 %v1099
    %1216 = vmatprep.subr.mxu0 %v1102
    %1217 = vmatpush1.msra.mxu0 %v1101
    %1218 = vmatprep.subr.mxu0 %v1104
    %1219 = vmatpush1.msra.mxu0 %v1103
    %1220 = vmatprep.subr.mxu0 %v1106
    %1221 = vmatpush1.msra.mxu0 %v1105
    %1222 = vmatprep.subr.mxu0 %v1108
    %1223 = vmatpush1.msra.mxu0 %v1107
    %1224 = vmatprep.subr.mxu0 %v1110
    %1225 = vmatpush1.msra.mxu0 %v1109
    %1226 = vmatprep.subr.mxu0 %v1112
    %1227 = vmatpush1.msra.mxu0 %v1111
    %1228 = vmatprep.subr.mxu0 %v1114
    %1229 = vmatpush1.msra.mxu0 %v1113
    %1230 = vmatprep.subr.mxu0 0.0
    %1231 = vmatpush1.msra.mxu0 0.0
    %1232 = vmatprep.subr.mxu0 0.0
    %1233 = vmatpush1.msra.mxu0 0.0
    %1234 = vmatprep.subr.mxu0 0.0
    %1235 = vmatpush1.msra.mxu0 0.0
    %1236 = vmatprep.subr.mxu0 0.0
    %1237 = vmatpush1.msra.mxu0 0.0
    %1238 = vmatprep.subr.mxu0 0.0
    %1239 = vmatpush1.msra.mxu0 0.0
    %1240 = vmatprep.subr.mxu0 0.0
    %1241 = vmatpush1.msra.mxu0 0.0
    %1242 = vmatprep.subr.mxu0 0.0
    %1243 = vmatpush1.msra.mxu0 0.0
    %1244 = vmatprep.subr.mxu0 0.0
    %1245 = vmatpush1.msra.mxu0 0.0
    %1246 = vmatprep.subr.mxu0 0.0
    %1247 = vmatpush1.msra.mxu0 0.0
    %1248 = vmatprep.subr.mxu0 0.0
    %1249 = vmatpush1.msra.mxu0 0.0
    %1250 = vmatprep.subr.mxu0 0.0
    %1251 = vmatpush1.msra.mxu0 0.0
    %1252 = vmatprep.subr.mxu0 0.0
    %1253 = vmatpush1.msra.mxu0 0.0
    %1254 = vmatprep.subr.mxu0 0.0
    %1255 = vmatpush1.msra.mxu0 0.0
    %1256 = vmatprep.subr.mxu0 0.0
    %1257 = vmatpush1.msra.mxu0 0.0
    %1258 = vmatprep.subr.mxu0 0.0
    %1259 = vmatpush1.msra.mxu0 0.0
    %1260 = vmatprep.subr.mxu0 0.0
    %1261 = vmatpush1.msra.mxu0 0.0
    %1262 = vmatprep.mubr.f32.mxu0 0.0
    %1263 = vmatmul.mubr.f32.gmra.mrb[0].mxu0 %v1018
    %v1264 = vpop.f32.mrb[0].mxu0
    %v1265 = vadd.f32 %v1194, %v1264
    %v1266 = vpop.f32.mrb[0].mxu0
    %v1267 = vadd.f32 %v1196, %v1266
    %1268 = vdwg.mxu0
    %v1269 = vld [vmem:[#allocation8] sm:$0xff]
    %v1270 = vld [vmem:[#allocation8 + $0x8] sm:$0xff]
    %v1271 = vld [vmem:[#allocation8 + $0x10] sm:$0xff]
    %v1272 = vld [vmem:[#allocation8 + $0x18] sm:$0xff]
    %v1273 = vld [vmem:[#allocation8 + $0x20] sm:$0xff]
    %v1274 = vld [vmem:[#allocation8 + $0x28] sm:$0xff]
    %v1275 = vld [vmem:[#allocation8 + $0x30] sm:$0xff]
    %v1276 = vld [vmem:[#allocation8 + $0x38] sm:$0xff]
    %v1277 = vld [vmem:[#allocation8 + $0x40] sm:$0xff]
    %v1278 = vld [vmem:[#allocation8 + $0x48] sm:$0xff]
    %v1279 = vld [vmem:[#allocation8 + $0x50] sm:$0xff]
    %v1280 = vld [vmem:[#allocation8 + $0x58] sm:$0xff]
    %v1281 = vld [vmem:[#allocation8 + $0x60] sm:$0xff]
    %v1282 = vld [vmem:[#allocation8 + $0x68] sm:$0xff]
    %v1283 = vld [vmem:[#allocation8 + $0x70] sm:$0xff]
    %v1284 = vld [vmem:[#allocation8 + $0x78] sm:$0xff]
    %v1285 = vld [vmem:[#allocation8 + $0x80] sm:$0xff]
    %v1286 = vld [vmem:[#allocation8 + $0x88] sm:$0xff]
    %v1287 = vld [vmem:[#allocation8 + $0x90] sm:$0xff]
    %v1288 = vld [vmem:[#allocation8 + $0x98] sm:$0xff]
    %v1289 = vld [vmem:[#allocation8 + $0xa0] sm:$0xff]
    %v1290 = vld [vmem:[#allocation8 + $0xa8] sm:$0xff]
    %v1291 = vld [vmem:[#allocation8 + $0xb0] sm:$0xff]
    %v1292 = vld [vmem:[#allocation8 + $0xb8] sm:$0xff]
    %v1293 = vld [vmem:[#allocation8 + $0xc0] sm:$0xff]
    %v1294 = vld [vmem:[#allocation8 + $0xc8] sm:$0xff]
    %v1295 = vld [vmem:[#allocation8 + $0xd0] sm:$0xff]
    %v1296 = vld [vmem:[#allocation8 + $0xd8] sm:$0xff]
    %v1297 = vld [vmem:[#allocation8 + $0xe0] sm:$0xff]
    %v1298 = vld [vmem:[#allocation8 + $0xe8] sm:$0xff]
    %v1299 = vld [vmem:[#allocation8 + $0xf0] sm:$0xff]
    %v1300 = vld [vmem:[#allocation8 + $0xf8] sm:$0xff]
    %v1301 = vld [vmem:[#allocation8 + $0x100] sm:$0xff]
    %v1302 = vld [vmem:[#allocation8 + $0x108] sm:$0xff]
    %v1303 = vld [vmem:[#allocation8 + $0x110] sm:$0xff]
    %v1304 = vld [vmem:[#allocation8 + $0x118] sm:$0xff]
    %v1305 = vld [vmem:[#allocation8 + $0x120] sm:$0xff]
    %v1306 = vld [vmem:[#allocation8 + $0x128] sm:$0xff]
    %v1307 = vld [vmem:[#allocation8 + $0x130] sm:$0xff]
    %v1308 = vld [vmem:[#allocation8 + $0x138] sm:$0xff]
    %v1309 = vld [vmem:[#allocation8 + $0x140] sm:$0xff]
    %v1310 = vld [vmem:[#allocation8 + $0x148] sm:$0xff]
    %v1311 = vld [vmem:[#allocation8 + $0x150] sm:$0xff]
    %v1312 = vld [vmem:[#allocation8 + $0x158] sm:$0xff]
    %v1313 = vld [vmem:[#allocation8 + $0x160] sm:$0xff]
    %v1314 = vld [vmem:[#allocation8 + $0x168] sm:$0xff]
    %v1315 = vld [vmem:[#allocation8 + $0x170] sm:$0xff]
    %v1316 = vld [vmem:[#allocation8 + $0x178] sm:$0xff]
    %v1317 = vld [vmem:[#allocation8 + $0x180] sm:$0xff]
    %v1318 = vld [vmem:[#allocation8 + $0x188] sm:$0xff]
    %v1319 = vld [vmem:[#allocation8 + $0x190] sm:$0xff]
    %v1320 = vld [vmem:[#allocation8 + $0x198] sm:$0xff]
    %v1321 = vld [vmem:[#allocation8 + $0x1a0] sm:$0xff]
    %v1322 = vld [vmem:[#allocation8 + $0x1a8] sm:$0xff]
    %v1323 = vld [vmem:[#allocation8 + $0x1b0] sm:$0xff]
    %v1324 = vld [vmem:[#allocation8 + $0x1b8] sm:$0xff]
    %v1325 = vld [vmem:[#allocation8 + $0x1c0] sm:$0xff]
    %v1326 = vld [vmem:[#allocation8 + $0x1c8] sm:$0xff]
    %v1327 = vld [vmem:[#allocation8 + $0x1d0] sm:$0xff]
    %v1328 = vld [vmem:[#allocation8 + $0x1d8] sm:$0xff]
    %v1329 = vld [vmem:[#allocation8 + $0x1e0] sm:$0xff]
    %v1330 = vld [vmem:[#allocation8 + $0x1e8] sm:$0xff]
    %v1331 = vld [vmem:[#allocation8 + $0x1f0] sm:$0xff]
    %v1332 = vld [vmem:[#allocation8 + $0x1f8] sm:$0xff]
    %v1333 = vld [vmem:[#allocation8 + $0x200] sm:$0xff]
    %v1334 = vld [vmem:[#allocation8 + $0x208] sm:$0xff]
    %v1335 = vld [vmem:[#allocation8 + $0x210] sm:$0xff]
    %v1336 = vld [vmem:[#allocation8 + $0x218] sm:$0xff]
    %v1337 = vld [vmem:[#allocation8 + $0x220] sm:$0xff]
    %v1338 = vld [vmem:[#allocation8 + $0x228] sm:$0xff]
    %v1339 = vld [vmem:[#allocation8 + $0x230] sm:$0xff]
    %v1340 = vld [vmem:[#allocation8 + $0x238] sm:$0xff]
    %v1341 = vld [vmem:[#allocation8 + $0x240] sm:$0xff]
    %v1342 = vld [vmem:[#allocation8 + $0x248] sm:$0xff]
    %v1343 = vld [vmem:[#allocation8 + $0x250] sm:$0xff]
    %v1344 = vld [vmem:[#allocation8 + $0x258] sm:$0xff]
    %v1345 = vld [vmem:[#allocation8 + $0x260] sm:$0xff]
    %v1346 = vld [vmem:[#allocation8 + $0x268] sm:$0xff]
    %v1347 = vld [vmem:[#allocation8 + $0x270] sm:$0xff]
    %v1348 = vld [vmem:[#allocation8 + $0x278] sm:$0xff]
    %v1349 = vld [vmem:[#allocation8 + $0x280] sm:$0xff]
    %v1350 = vld [vmem:[#allocation8 + $0x288] sm:$0xff]
    %v1351 = vld [vmem:[#allocation8 + $0x290] sm:$0xff]
    %v1352 = vld [vmem:[#allocation8 + $0x298] sm:$0xff]
    %v1353 = vld [vmem:[#allocation8 + $0x2a0] sm:$0xff]
    %v1354 = vld [vmem:[#allocation8 + $0x2a8] sm:$0xff]
    %v1355 = vld [vmem:[#allocation8 + $0x2b0] sm:$0xff]
    %v1356 = vld [vmem:[#allocation8 + $0x2b8] sm:$0xff]
    %v1357 = vld [vmem:[#allocation8 + $0x2c0] sm:$0xff]
    %v1358 = vld [vmem:[#allocation8 + $0x2c8] sm:$0xff]
    %v1359 = vld [vmem:[#allocation8 + $0x2d0] sm:$0xff]
    %v1360 = vld [vmem:[#allocation8 + $0x2d8] sm:$0xff]
    %v1361 = vld [vmem:[#allocation8 + $0x2e0] sm:$0xff]
    %v1362 = vld [vmem:[#allocation8 + $0x2e8] sm:$0xff]
    %v1363 = vld [vmem:[#allocation8 + $0x2f0] sm:$0xff]
    %v1364 = vld [vmem:[#allocation8 + $0x2f8] sm:$0xff]
    %v1365 = vld [vmem:[#allocation8 + $0x300] sm:$0xff]
    %v1366 = vld [vmem:[#allocation8 + $0x308] sm:$0xff]
    %v1367 = vld [vmem:[#allocation8 + $0x310] sm:$0xff]
    %v1368 = vld [vmem:[#allocation8 + $0x318] sm:$0xff]
    %v1369 = vld [vmem:[#allocation8 + $0x320] sm:$0xff]
    %v1370 = vld [vmem:[#allocation8 + $0x328] sm:$0xff]
    %v1371 = vld [vmem:[#allocation8 + $0x330] sm:$0xff]
    %v1372 = vld [vmem:[#allocation8 + $0x338] sm:$0xff]
    %v1373 = vld [vmem:[#allocation8 + $0x340] sm:$0xff]
    %v1374 = vld [vmem:[#allocation8 + $0x348] sm:$0xff]
    %v1375 = vld [vmem:[#allocation8 + $0x350] sm:$0xff]
    %v1376 = vld [vmem:[#allocation8 + $0x358] sm:$0xff]
    %v1377 = vld [vmem:[#allocation8 + $0x360] sm:$0xff]
    %v1378 = vld [vmem:[#allocation8 + $0x368] sm:$0xff]
    %v1379 = vld [vmem:[#allocation8 + $0x370] sm:$0xff]
    %v1380 = vld [vmem:[#allocation8 + $0x378] sm:$0xff]
    %v1381 = vld [vmem:[#allocation8 + $0x380] sm:$0xff]
    %v1382 = vld [vmem:[#allocation8 + $0x388] sm:$0xff]
    %v1383 = vld [vmem:[#allocation8 + $0x390] sm:$0xff]
    %v1384 = vld [vmem:[#allocation8 + $0x398] sm:$0xff]
    %v1385 = vld [vmem:[#allocation8 + $0x3a0] sm:$0xff]
    %v1386 = vld [vmem:[#allocation8 + $0x3a8] sm:$0xff]
    %v1387 = vld [vmem:[#allocation8 + $0x3b0] sm:$0xff]
    %v1388 = vld [vmem:[#allocation8 + $0x3b8] sm:$0xff]
    %v1389 = vld [vmem:[#allocation8 + $0x3c0] sm:$0xff]
    %v1390 = vld [vmem:[#allocation8 + $0x3c8] sm:$0xff]
    %v1391 = vld [vmem:[#allocation8 + $0x3d0] sm:$0xff]
    %v1392 = vld [vmem:[#allocation8 + $0x3d8] sm:$0xff]
    %v1393 = vld [vmem:[#allocation8 + $0x3e0] sm:$0xff]
    %v1394 = vld [vmem:[#allocation8 + $0x3e8] sm:$0xff]
    %v1395 = vld [vmem:[#allocation8 + $0x3f0] sm:$0xff]
    %v1396 = vld [vmem:[#allocation8 + $0x3f8] sm:$0xff]
    %v1397 = vld [vmem:[#allocation10] sm:$0xff]
    %v1398 = vld [vmem:[#allocation10 + $0x8] sm:$0xff]
    %v1399 = vld [vmem:[#allocation10 + $0x10] sm:$0xff]
    %v1400 = vld [vmem:[#allocation10 + $0x18] sm:$0xff]
    %v1401 = vld [vmem:[#allocation10 + $0x20] sm:$0xff]
    %v1402 = vld [vmem:[#allocation10 + $0x28] sm:$0xff]
    %v1403 = vld [vmem:[#allocation10 + $0x30] sm:$0xff]
    %v1404 = vld [vmem:[#allocation10 + $0x38] sm:$0xff]
    %v1405 = vld [vmem:[#allocation10 + $0x40] sm:$0xff]
    %v1406 = vld [vmem:[#allocation10 + $0x48] sm:$0xff]
    %v1407 = vld [vmem:[#allocation10 + $0x50] sm:$0xff]
    %v1408 = vld [vmem:[#allocation10 + $0x58] sm:$0xff]
    %v1409 = vld [vmem:[#allocation10 + $0x60] sm:$0xff]
    %v1410 = vld [vmem:[#allocation10 + $0x68] sm:$0xff]
    %v1411 = vld [vmem:[#allocation10 + $0x70] sm:$0xff]
    %v1412 = vld [vmem:[#allocation10 + $0x78] sm:$0xff]
    %v1413 = vld [vmem:[#allocation10 + $0x80] sm:$0xff]
    %v1414 = vld [vmem:[#allocation10 + $0x88] sm:$0xff]
    %v1415 = vld [vmem:[#allocation10 + $0x90] sm:$0xff]
    %v1416 = vld [vmem:[#allocation10 + $0x98] sm:$0xff]
    %v1417 = vld [vmem:[#allocation10 + $0xa0] sm:$0xff]
    %v1418 = vld [vmem:[#allocation10 + $0xa8] sm:$0xff]
    %v1419 = vld [vmem:[#allocation10 + $0xb0] sm:$0xff]
    %v1420 = vld [vmem:[#allocation10 + $0xb8] sm:$0xff]
    %v1421 = vld [vmem:[#allocation10 + $0xc0] sm:$0xff]
    %v1422 = vld [vmem:[#allocation10 + $0xc8] sm:$0xff]
    %v1423 = vld [vmem:[#allocation10 + $0xd0] sm:$0xff]
    %v1424 = vld [vmem:[#allocation10 + $0xd8] sm:$0xff]
    %v1425 = vld [vmem:[#allocation10 + $0xe0] sm:$0xff]
    %v1426 = vld [vmem:[#allocation10 + $0xe8] sm:$0xff]
    %v1427 = vld [vmem:[#allocation10 + $0xf0] sm:$0xff]
    %v1428 = vld [vmem:[#allocation10 + $0xf8] sm:$0xff]
    %v1429 = vld [vmem:[#allocation10 + $0x100] sm:$0xff]
    %v1430 = vld [vmem:[#allocation10 + $0x108] sm:$0xff]
    %v1431 = vld [vmem:[#allocation10 + $0x110] sm:$0xff]
    %v1432 = vld [vmem:[#allocation10 + $0x118] sm:$0xff]
    %v1433 = vld [vmem:[#allocation10 + $0x120] sm:$0xff]
    %v1434 = vld [vmem:[#allocation10 + $0x128] sm:$0xff]
    %v1435 = vld [vmem:[#allocation10 + $0x130] sm:$0xff]
    %v1436 = vld [vmem:[#allocation10 + $0x138] sm:$0xff]
    %v1437 = vld [vmem:[#allocation10 + $0x140] sm:$0xff]
    %v1438 = vld [vmem:[#allocation10 + $0x148] sm:$0xff]
    %v1439 = vld [vmem:[#allocation10 + $0x150] sm:$0xff]
    %v1440 = vld [vmem:[#allocation10 + $0x158] sm:$0xff]
    %v1441 = vld [vmem:[#allocation10 + $0x160] sm:$0xff]
    %v1442 = vld [vmem:[#allocation10 + $0x168] sm:$0xff]
    %v1443 = vld [vmem:[#allocation10 + $0x170] sm:$0xff]
    %v1444 = vld [vmem:[#allocation10 + $0x178] sm:$0xff]
    %v1445 = vld [vmem:[#allocation10 + $0x180] sm:$0xff]
    %v1446 = vld [vmem:[#allocation10 + $0x188] sm:$0xff]
    %v1447 = vld [vmem:[#allocation10 + $0x190] sm:$0xff]
    %v1448 = vld [vmem:[#allocation10 + $0x198] sm:$0xff]
    %v1449 = vld [vmem:[#allocation10 + $0x1a0] sm:$0xff]
    %v1450 = vld [vmem:[#allocation10 + $0x1a8] sm:$0xff]
    %v1451 = vld [vmem:[#allocation10 + $0x1b0] sm:$0xff]
    %v1452 = vld [vmem:[#allocation10 + $0x1b8] sm:$0xff]
    %v1453 = vld [vmem:[#allocation10 + $0x1c0] sm:$0xff]
    %v1454 = vld [vmem:[#allocation10 + $0x1c8] sm:$0xff]
    %v1455 = vld [vmem:[#allocation10 + $0x1d0] sm:$0xff]
    %v1456 = vld [vmem:[#allocation10 + $0x1d8] sm:$0xff]
    %v1457 = vld [vmem:[#allocation10 + $0x1e0] sm:$0xff]
    %v1458 = vld [vmem:[#allocation10 + $0x1e8] sm:$0xff]
    %v1459 = vld [vmem:[#allocation10 + $0x1f0] sm:$0xff]
    %v1460 = vld [vmem:[#allocation10 + $0x1f8] sm:$0xff]
    %v1461 = vld [vmem:[#allocation10 + $0x200] sm:$0xff]
    %v1462 = vld [vmem:[#allocation10 + $0x208] sm:$0xff]
    %v1463 = vld [vmem:[#allocation10 + $0x210] sm:$0xff]
    %v1464 = vld [vmem:[#allocation10 + $0x218] sm:$0xff]
    %v1465 = vld [vmem:[#allocation10 + $0x220] sm:$0xff]
    %v1466 = vld [vmem:[#allocation10 + $0x228] sm:$0xff]
    %v1467 = vld [vmem:[#allocation10 + $0x230] sm:$0xff]
    %v1468 = vld [vmem:[#allocation10 + $0x238] sm:$0xff]
    %v1469 = vld [vmem:[#allocation10 + $0x240] sm:$0xff]
    %v1470 = vld [vmem:[#allocation10 + $0x248] sm:$0xff]
    %v1471 = vld [vmem:[#allocation10 + $0x250] sm:$0xff]
    %v1472 = vld [vmem:[#allocation10 + $0x258] sm:$0xff]
    %v1473 = vld [vmem:[#allocation10 + $0x260] sm:$0xff]
    %v1474 = vld [vmem:[#allocation10 + $0x268] sm:$0xff]
    %v1475 = vld [vmem:[#allocation10 + $0x270] sm:$0xff]
    %v1476 = vld [vmem:[#allocation10 + $0x278] sm:$0xff]
    %v1477 = vld [vmem:[#allocation10 + $0x280] sm:$0xff]
    %v1478 = vld [vmem:[#allocation10 + $0x288] sm:$0xff]
    %v1479 = vld [vmem:[#allocation10 + $0x290] sm:$0xff]
    %v1480 = vld [vmem:[#allocation10 + $0x298] sm:$0xff]
    %v1481 = vld [vmem:[#allocation10 + $0x2a0] sm:$0xff]
    %v1482 = vld [vmem:[#allocation10 + $0x2a8] sm:$0xff]
    %v1483 = vld [vmem:[#allocation10 + $0x2b0] sm:$0xff]
    %v1484 = vld [vmem:[#allocation10 + $0x2b8] sm:$0xff]
    %v1485 = vld [vmem:[#allocation10 + $0x2c0] sm:$0xff]
    %v1486 = vld [vmem:[#allocation10 + $0x2c8] sm:$0xff]
    %v1487 = vld [vmem:[#allocation10 + $0x2d0] sm:$0xff]
    %v1488 = vld [vmem:[#allocation10 + $0x2d8] sm:$0xff]
    %v1489 = vld [vmem:[#allocation10 + $0x2e0] sm:$0xff]
    %v1490 = vld [vmem:[#allocation10 + $0x2e8] sm:$0xff]
    %v1491 = vld [vmem:[#allocation10 + $0x2f0] sm:$0xff]
    %v1492 = vld [vmem:[#allocation10 + $0x2f8] sm:$0xff]
    %v1493 = vld [vmem:[#allocation10 + $0x300] sm:$0xff]
    %v1494 = vld [vmem:[#allocation10 + $0x308] sm:$0xff]
    %v1495 = vld [vmem:[#allocation10 + $0x310] sm:$0xff]
    %v1496 = vld [vmem:[#allocation10 + $0x318] sm:$0xff]
    %v1497 = vld [vmem:[#allocation10 + $0x320] sm:$0xff]
    %v1498 = vld [vmem:[#allocation10 + $0x328] sm:$0xff]
    %v1499 = vld [vmem:[#allocation10 + $0x330] sm:$0xff]
    %v1500 = vld [vmem:[#allocation10 + $0x338] sm:$0xff]
    %v1501 = vld [vmem:[#allocation10 + $0x340] sm:$0xff]
    %v1502 = vld [vmem:[#allocation10 + $0x348] sm:$0xff]
    %v1503 = vld [vmem:[#allocation10 + $0x350] sm:$0xff]
    %v1504 = vld [vmem:[#allocation10 + $0x358] sm:$0xff]
    %v1505 = vld [vmem:[#allocation10 + $0x360] sm:$0xff]
    %v1506 = vld [vmem:[#allocation10 + $0x368] sm:$0xff]
    %v1507 = vld [vmem:[#allocation10 + $0x370] sm:$0xff]
    %v1508 = vld [vmem:[#allocation10 + $0x378] sm:$0xff]
    %v1509 = vld [vmem:[#allocation10 + $0x380] sm:$0xff]
    %v1510 = vld [vmem:[#allocation10 + $0x388] sm:$0xff]
    %v1511 = vld [vmem:[#allocation10 + $0x390] sm:$0xff]
    %v1512 = vld [vmem:[#allocation10 + $0x398] sm:$0xff]
    %v1513 = vld [vmem:[#allocation10 + $0x3a0] sm:$0xff]
    %v1514 = vld [vmem:[#allocation10 + $0x3a8] sm:$0xff]
    %v1515 = vld [vmem:[#allocation10 + $0x3b0] sm:$0xff]
    %v1516 = vld [vmem:[#allocation10 + $0x3b8] sm:$0xff]
    %v1517 = vld [vmem:[#allocation10 + $0x3c0] sm:$0xff]
    %v1518 = vld [vmem:[#allocation10 + $0x3c8] sm:$0xff]
    %v1519 = vld [vmem:[#allocation10 + $0x3d0] sm:$0xff]
    %v1520 = vld [vmem:[#allocation10 + $0x3d8] sm:$0xff]
    %v1521 = vld [vmem:[#allocation10 + $0x3e0] sm:$0xff]
    %v1522 = vld [vmem:[#allocation10 + $0x3e8] sm:$0xff]
    %v1523 = vld [vmem:[#allocation10 + $0x3f0] sm:$0xff]
    %v1524 = vld [vmem:[#allocation10 + $0x3f8] sm:$0xff]
    %v1525 = vld [vmem:[#allocation10 + $0x400] sm:$0xff]
    %v1526 = vld [vmem:[#allocation10 + $0x408] sm:$0xff]
    %v1527 = vld [vmem:[#allocation10 + $0x410] sm:$0xff]
    %v1528 = vld [vmem:[#allocation10 + $0x418] sm:$0xff]
    %v1529 = vld [vmem:[#allocation10 + $0x420] sm:$0xff]
    %v1530 = vld [vmem:[#allocation10 + $0x428] sm:$0xff]
    %v1531 = vld [vmem:[#allocation10 + $0x430] sm:$0xff]
    %v1532 = vld [vmem:[#allocation10 + $0x438] sm:$0xff]
    %v1533 = vld [vmem:[#allocation10 + $0x440] sm:$0xff]
    %v1534 = vld [vmem:[#allocation10 + $0x448] sm:$0xff]
    %v1535 = vld [vmem:[#allocation10 + $0x450] sm:$0xff]
    %v1536 = vld [vmem:[#allocation10 + $0x458] sm:$0xff]
    %v1537 = vld [vmem:[#allocation10 + $0x460] sm:$0xff]
    %v1538 = vld [vmem:[#allocation10 + $0x468] sm:$0xff]
    %v1539 = vld [vmem:[#allocation10 + $0x470] sm:$0xff]
    %v1540 = vld [vmem:[#allocation10 + $0x478] sm:$0xff]
    %v1541 = vld [vmem:[#allocation10 + $0x480] sm:$0xff]
    %v1542 = vld [vmem:[#allocation10 + $0x488] sm:$0xff]
    %v1543 = vld [vmem:[#allocation10 + $0x490] sm:$0xff]
    %v1544 = vld [vmem:[#allocation10 + $0x498] sm:$0xff]
    %v1545 = vld [vmem:[#allocation10 + $0x4a0] sm:$0xff]
    %v1546 = vld [vmem:[#allocation10 + $0x4a8] sm:$0xff]
    %v1547 = vld [vmem:[#allocation10 + $0x4b0] sm:$0xff]
    %v1548 = vld [vmem:[#allocation10 + $0x4b8] sm:$0xff]
    %v1549 = vld [vmem:[#allocation10 + $0x4c0] sm:$0xff]
    %v1550 = vld [vmem:[#allocation10 + $0x4c8] sm:$0xff]
    %v1551 = vld [vmem:[#allocation10 + $0x4d0] sm:$0xff]
    %v1552 = vld [vmem:[#allocation10 + $0x4d8] sm:$0xff]
    %v1553 = vld [vmem:[#allocation10 + $0x4e0] sm:$0xff]
    %v1554 = vld [vmem:[#allocation10 + $0x4e8] sm:$0xff]
    %v1555 = vld [vmem:[#allocation10 + $0x4f0] sm:$0xff]
    %v1556 = vld [vmem:[#allocation10 + $0x4f8] sm:$0xff]
    %v1557 = vld [vmem:[#allocation10 + $0x500] sm:$0xff]
    %v1558 = vld [vmem:[#allocation10 + $0x508] sm:$0xff]
    %v1559 = vld [vmem:[#allocation10 + $0x510] sm:$0xff]
    %v1560 = vld [vmem:[#allocation10 + $0x518] sm:$0xff]
    %v1561 = vld [vmem:[#allocation10 + $0x520] sm:$0xff]
    %v1562 = vld [vmem:[#allocation10 + $0x528] sm:$0xff]
    %v1563 = vld [vmem:[#allocation10 + $0x530] sm:$0xff]
    %v1564 = vld [vmem:[#allocation10 + $0x538] sm:$0xff]
    %v1565 = vld [vmem:[#allocation10 + $0x540] sm:$0xff]
    %v1566 = vld [vmem:[#allocation10 + $0x548] sm:$0xff]
    %v1567 = vld [vmem:[#allocation10 + $0x550] sm:$0xff]
    %v1568 = vld [vmem:[#allocation10 + $0x558] sm:$0xff]
    %v1569 = vld [vmem:[#allocation10 + $0x560] sm:$0xff]
    %v1570 = vld [vmem:[#allocation10 + $0x568] sm:$0xff]
    %v1571 = vld [vmem:[#allocation10 + $0x570] sm:$0xff]
    %v1572 = vld [vmem:[#allocation10 + $0x578] sm:$0xff]
    %v1573 = vld [vmem:[#allocation10 + $0x580] sm:$0xff]
    %v1574 = vld [vmem:[#allocation10 + $0x588] sm:$0xff]
    %v1575 = vld [vmem:[#allocation10 + $0x590] sm:$0xff]
    %v1576 = vld [vmem:[#allocation10 + $0x598] sm:$0xff]
    %v1577 = vld [vmem:[#allocation10 + $0x5a0] sm:$0xff]
    %v1578 = vld [vmem:[#allocation10 + $0x5a8] sm:$0xff]
    %v1579 = vld [vmem:[#allocation10 + $0x5b0] sm:$0xff]
    %v1580 = vld [vmem:[#allocation10 + $0x5b8] sm:$0xff]
    %v1581 = vld [vmem:[#allocation10 + $0x5c0] sm:$0xff]
    %v1582 = vld [vmem:[#allocation10 + $0x5c8] sm:$0xff]
    %v1583 = vld [vmem:[#allocation10 + $0x5d0] sm:$0xff]
    %v1584 = vld [vmem:[#allocation10 + $0x5d8] sm:$0xff]
    %v1585 = vld [vmem:[#allocation10 + $0x5e0] sm:$0xff]
    %v1586 = vld [vmem:[#allocation10 + $0x5e8] sm:$0xff]
    %v1587 = vld [vmem:[#allocation10 + $0x5f0] sm:$0xff]
    %v1588 = vld [vmem:[#allocation10 + $0x5f8] sm:$0xff]
    %1589 = vmatprep.subr.mxu0 %v1398
    %1590 = vmatpush1.msra.mxu0 %v1397
    %1591 = vmatprep.subr.mxu0 %v1402
    %1592 = vmatpush1.msra.mxu0 %v1401
    %1593 = vmatprep.subr.mxu0 %v1406
    %1594 = vmatpush1.msra.mxu0 %v1405
    %1595 = vmatprep.subr.mxu0 %v1410
    %1596 = vmatpush1.msra.mxu0 %v1409
    %1597 = vmatprep.subr.mxu0 %v1414
    %1598 = vmatpush1.msra.mxu0 %v1413
    %1599 = vmatprep.subr.mxu0 %v1418
    %1600 = vmatpush1.msra.mxu0 %v1417
    %1601 = vmatprep.subr.mxu0 %v1422
    %1602 = vmatpush1.msra.mxu0 %v1421
    %1603 = vmatprep.subr.mxu0 %v1426
    %1604 = vmatpush1.msra.mxu0 %v1425
    %1605 = vmatprep.subr.mxu0 %v1430
    %1606 = vmatpush1.msra.mxu0 %v1429
    %1607 = vmatprep.subr.mxu0 %v1434
    %1608 = vmatpush1.msra.mxu0 %v1433
    %1609 = vmatprep.subr.mxu0 %v1438
    %1610 = vmatpush1.msra.mxu0 %v1437
    %1611 = vmatprep.subr.mxu0 %v1442
    %1612 = vmatpush1.msra.mxu0 %v1441
    %1613 = vmatprep.subr.mxu0 %v1446
    %1614 = vmatpush1.msra.mxu0 %v1445
    %1615 = vmatprep.subr.mxu0 %v1450
    %1616 = vmatpush1.msra.mxu0 %v1449
    %1617 = vmatprep.subr.mxu0 %v1454
    %1618 = vmatpush1.msra.mxu0 %v1453
    %1619 = vmatprep.subr.mxu0 %v1458
    %1620 = vmatpush1.msra.mxu0 %v1457
    %1621 = vmatprep.subr.mxu0 %v1462
    %1622 = vmatpush1.msra.mxu0 %v1461
    %1623 = vmatprep.subr.mxu0 %v1466
    %1624 = vmatpush1.msra.mxu0 %v1465
    %1625 = vmatprep.subr.mxu0 %v1470
    %1626 = vmatpush1.msra.mxu0 %v1469
    %1627 = vmatprep.subr.mxu0 %v1474
    %1628 = vmatpush1.msra.mxu0 %v1473
    %1629 = vmatprep.subr.mxu0 %v1478
    %1630 = vmatpush1.msra.mxu0 %v1477
    %1631 = vmatprep.subr.mxu0 %v1482
    %1632 = vmatpush1.msra.mxu0 %v1481
    %1633 = vmatprep.subr.mxu0 %v1486
    %1634 = vmatpush1.msra.mxu0 %v1485
    %1635 = vmatprep.subr.mxu0 %v1490
    %1636 = vmatpush1.msra.mxu0 %v1489
    %1637 = vmatprep.subr.mxu0 %v1494
    %1638 = vmatpush1.msra.mxu0 %v1493
    %1639 = vmatprep.subr.mxu0 %v1498
    %1640 = vmatpush1.msra.mxu0 %v1497
    %1641 = vmatprep.subr.mxu0 %v1502
    %1642 = vmatpush1.msra.mxu0 %v1501
    %1643 = vmatprep.subr.mxu0 %v1506
    %1644 = vmatpush1.msra.mxu0 %v1505
    %1645 = vmatprep.subr.mxu0 %v1510
    %1646 = vmatpush1.msra.mxu0 %v1509
    %1647 = vmatprep.subr.mxu0 %v1514
    %1648 = vmatpush1.msra.mxu0 %v1513
    %1649 = vmatprep.subr.mxu0 %v1518
    %1650 = vmatpush1.msra.mxu0 %v1517
    %1651 = vmatprep.subr.mxu0 %v1522
    %1652 = vmatpush1.msra.mxu0 %v1521
    %1653 = vmatprep.mubr.f32.mxu0 %v125
    %1654 = vmatmul.mubr.f32.gmra.mrb[0].mxu0 %v124
    %v1655 = vpop.f32.mrb[0].mxu0
    %v1656 = vadd.f32 0.0, %v1655
    %v1657 = vpop.f32.mrb[0].mxu0
    %v1658 = vadd.f32 0.0, %v1657
    %1659 = vdwg.mxu0
    %1660 = vmatprep.subr.mxu0 %v1526
    %1661 = vmatpush1.msra.mxu0 %v1525
    %1662 = vmatprep.subr.mxu0 %v1530
    %1663 = vmatpush1.msra.mxu0 %v1529
    %1664 = vmatprep.subr.mxu0 %v1534
    %1665 = vmatpush1.msra.mxu0 %v1533
    %1666 = vmatprep.subr.mxu0 %v1538
    %1667 = vmatpush1.msra.mxu0 %v1537
    %1668 = vmatprep.subr.mxu0 %v1542
    %1669 = vmatpush1.msra.mxu0 %v1541
    %1670 = vmatprep.subr.mxu0 %v1546
    %1671 = vmatpush1.msra.mxu0 %v1545
    %1672 = vmatprep.subr.mxu0 %v1550
    %1673 = vmatpush1.msra.mxu0 %v1549
    %1674 = vmatprep.subr.mxu0 %v1554
    %1675 = vmatpush1.msra.mxu0 %v1553
    %1676 = vmatprep.subr.mxu0 %v1558
    %1677 = vmatpush1.msra.mxu0 %v1557
    %1678 = vmatprep.subr.mxu0 %v1562
    %1679 = vmatpush1.msra.mxu0 %v1561
    %1680 = vmatprep.subr.mxu0 %v1566
    %1681 = vmatpush1.msra.mxu0 %v1565
    %1682 = vmatprep.subr.mxu0 %v1570
    %1683 = vmatpush1.msra.mxu0 %v1569
    %1684 = vmatprep.subr.mxu0 %v1574
    %1685 = vmatpush1.msra.mxu0 %v1573
    %1686 = vmatprep.subr.mxu0 %v1578
    %1687 = vmatpush1.msra.mxu0 %v1577
    %1688 = vmatprep.subr.mxu0 %v1582
    %1689 = vmatpush1.msra.mxu0 %v1581
    %1690 = vmatprep.subr.mxu0 %v1586
    %1691 = vmatpush1.msra.mxu0 %v1585
    %1692 = vmatprep.subr.mxu0 0.0
    %1693 = vmatpush1.msra.mxu0 0.0
    %1694 = vmatprep.subr.mxu0 0.0
    %1695 = vmatpush1.msra.mxu0 0.0
    %1696 = vmatprep.subr.mxu0 0.0
    %1697 = vmatpush1.msra.mxu0 0.0
    %1698 = vmatprep.subr.mxu0 0.0
    %1699 = vmatpush1.msra.mxu0 0.0
    %1700 = vmatprep.subr.mxu0 0.0
    %1701 = vmatpush1.msra.mxu0 0.0
    %1702 = vmatprep.subr.mxu0 0.0
    %1703 = vmatpush1.msra.mxu0 0.0
    %1704 = vmatprep.subr.mxu0 0.0
    %1705 = vmatpush1.msra.mxu0 0.0
    %1706 = vmatprep.subr.mxu0 0.0
    %1707 = vmatpush1.msra.mxu0 0.0
    %1708 = vmatprep.subr.mxu0 0.0
    %1709 = vmatpush1.msra.mxu0 0.0
    %1710 = vmatprep.subr.mxu0 0.0
    %1711 = vmatpush1.msra.mxu0 0.0
    %1712 = vmatprep.subr.mxu0 0.0
    %1713 = vmatpush1.msra.mxu0 0.0
    %1714 = vmatprep.subr.mxu0 0.0
    %1715 = vmatpush1.msra.mxu0 0.0
    %1716 = vmatprep.subr.mxu0 0.0
    %1717 = vmatpush1.msra.mxu0 0.0
    %1718 = vmatprep.subr.mxu0 0.0
    %1719 = vmatpush1.msra.mxu0 0.0
    %1720 = vmatprep.subr.mxu0 0.0
    %1721 = vmatpush1.msra.mxu0 0.0
    %1722 = vmatprep.subr.mxu0 0.0
    %1723 = vmatpush1.msra.mxu0 0.0
    %1724 = vmatprep.mubr.f32.mxu0 0.0
    %1725 = vmatmul.mubr.f32.gmra.mrb[0].mxu0 %v126
    %v1726 = vpop.f32.mrb[0].mxu0
    %v1727 = vadd.f32 %v1656, %v1726
    %v1728 = vpop.f32.mrb[0].mxu0
    %v1729 = vadd.f32 %v1658, %v1728
    %1730 = vdwg.mxu0
    %1731 = vmatprep.subr.mxu0 %v1400
    %1732 = vmatpush1.msra.mxu0 %v1399
    %1733 = vmatprep.subr.mxu0 %v1404
    %1734 = vmatpush1.msra.mxu0 %v1403
    %1735 = vmatprep.subr.mxu0 %v1408
    %1736 = vmatpush1.msra.mxu0 %v1407
    %1737 = vmatprep.subr.mxu0 %v1412
    %1738 = vmatpush1.msra.mxu0 %v1411
    %1739 = vmatprep.subr.mxu0 %v1416
    %1740 = vmatpush1.msra.mxu0 %v1415
    %1741 = vmatprep.subr.mxu0 %v1420
    %1742 = vmatpush1.msra.mxu0 %v1419
    %1743 = vmatprep.subr.mxu0 %v1424
    %1744 = vmatpush1.msra.mxu0 %v1423
    %1745 = vmatprep.subr.mxu0 %v1428
    %1746 = vmatpush1.msra.mxu0 %v1427
    %1747 = vmatprep.subr.mxu0 %v1432
    %1748 = vmatpush1.msra.mxu0 %v1431
    %1749 = vmatprep.subr.mxu0 %v1436
    %1750 = vmatpush1.msra.mxu0 %v1435
    %1751 = vmatprep.subr.mxu0 %v1440
    %1752 = vmatpush1.msra.mxu0 %v1439
    %1753 = vmatprep.subr.mxu0 %v1444
    %1754 = vmatpush1.msra.mxu0 %v1443
    %1755 = vmatprep.subr.mxu0 %v1448
    %1756 = vmatpush1.msra.mxu0 %v1447
    %1757 = vmatprep.subr.mxu0 %v1452
    %1758 = vmatpush1.msra.mxu0 %v1451
    %1759 = vmatprep.subr.mxu0 %v1456
    %1760 = vmatpush1.msra.mxu0 %v1455
    %1761 = vmatprep.subr.mxu0 %v1460
    %1762 = vmatpush1.msra.mxu0 %v1459
    %1763 = vmatprep.subr.mxu0 %v1464
    %1764 = vmatpush1.msra.mxu0 %v1463
    %1765 = vmatprep.subr.mxu0 %v1468
    %1766 = vmatpush1.msra.mxu0 %v1467
    %1767 = vmatprep.subr.mxu0 %v1472
    %1768 = vmatpush1.msra.mxu0 %v1471
    %1769 = vmatprep.subr.mxu0 %v1476
    %1770 = vmatpush1.msra.mxu0 %v1475
    %1771 = vmatprep.subr.mxu0 %v1480
    %1772 = vmatpush1.msra.mxu0 %v1479
    %1773 = vmatprep.subr.mxu0 %v1484
    %1774 = vmatpush1.msra.mxu0 %v1483
    %1775 = vmatprep.subr.mxu0 %v1488
    %1776 = vmatpush1.msra.mxu0 %v1487
    %1777 = vmatprep.subr.mxu0 %v1492
    %1778 = vmatpush1.msra.mxu0 %v1491
    %1779 = vmatprep.subr.mxu0 %v1496
    %1780 = vmatpush1.msra.mxu0 %v1495
    %1781 = vmatprep.subr.mxu0 %v1500
    %1782 = vmatpush1.msra.mxu0 %v1499
    %1783 = vmatprep.subr.mxu0 %v1504
    %1784 = vmatpush1.msra.mxu0 %v1503
    %1785 = vmatprep.subr.mxu0 %v1508
    %1786 = vmatpush1.msra.mxu0 %v1507
    %1787 = vmatprep.subr.mxu0 %v1512
    %1788 = vmatpush1.msra.mxu0 %v1511
    %1789 = vmatprep.subr.mxu0 %v1516
    %1790 = vmatpush1.msra.mxu0 %v1515
    %1791 = vmatprep.subr.mxu0 %v1520
    %1792 = vmatpush1.msra.mxu0 %v1519
    %1793 = vmatprep.subr.mxu0 %v1524
    %1794 = vmatpush1.msra.mxu0 %v1523
    %1795 = vmatprep.mubr.f32.mxu0 %v125
    %1796 = vmatmul.mubr.f32.gmra.mrb[0].mxu0 %v124
    %v1797 = vpop.f32.mrb[0].mxu0
    %v1798 = vadd.f32 0.0, %v1797
    %v1799 = vpop.f32.mrb[0].mxu0
    %v1800 = vadd.f32 0.0, %v1799
    %1801 = vdwg.mxu0
    %1802 = vmatprep.subr.mxu0 %v1528
    %1803 = vmatpush1.msra.mxu0 %v1527
    %1804 = vmatprep.subr.mxu0 %v1532
    %1805 = vmatpush1.msra.mxu0 %v1531
    %1806 = vmatprep.subr.mxu0 %v1536
    %1807 = vmatpush1.msra.mxu0 %v1535
    %1808 = vmatprep.subr.mxu0 %v1540
    %1809 = vmatpush1.msra.mxu0 %v1539
    %1810 = vmatprep.subr.mxu0 %v1544
    %1811 = vmatpush1.msra.mxu0 %v1543
    %1812 = vmatprep.subr.mxu0 %v1548
    %1813 = vmatpush1.msra.mxu0 %v1547
    %1814 = vmatprep.subr.mxu0 %v1552
    %1815 = vmatpush1.msra.mxu0 %v1551
    %1816 = vmatprep.subr.mxu0 %v1556
    %1817 = vmatpush1.msra.mxu0 %v1555
    %1818 = vmatprep.subr.mxu0 %v1560
    %1819 = vmatpush1.msra.mxu0 %v1559
    %1820 = vmatprep.subr.mxu0 %v1564
    %1821 = vmatpush1.msra.mxu0 %v1563
    %1822 = vmatprep.subr.mxu0 %v1568
    %1823 = vmatpush1.msra.mxu0 %v1567
    %1824 = vmatprep.subr.mxu0 %v1572
    %1825 = vmatpush1.msra.mxu0 %v1571
    %1826 = vmatprep.subr.mxu0 %v1576
    %1827 = vmatpush1.msra.mxu0 %v1575
    %1828 = vmatprep.subr.mxu0 %v1580
    %1829 = vmatpush1.msra.mxu0 %v1579
    %1830 = vmatprep.subr.mxu0 %v1584
    %1831 = vmatpush1.msra.mxu0 %v1583
    %1832 = vmatprep.subr.mxu0 %v1588
    %1833 = vmatpush1.msra.mxu0 %v1587
    %1834 = vmatprep.subr.mxu0 0.0
    %1835 = vmatpush1.msra.mxu0 0.0
    %1836 = vmatprep.subr.mxu0 0.0
    %1837 = vmatpush1.msra.mxu0 0.0
    %1838 = vmatprep.subr.mxu0 0.0
    %1839 = vmatpush1.msra.mxu0 0.0
    %1840 = vmatprep.subr.mxu0 0.0
    %1841 = vmatpush1.msra.mxu0 0.0
    %1842 = vmatprep.subr.mxu0 0.0
    %1843 = vmatpush1.msra.mxu0 0.0
    %1844 = vmatprep.subr.mxu0 0.0
    %1845 = vmatpush1.msra.mxu0 0.0
    %1846 = vmatprep.subr.mxu0 0.0
    %1847 = vmatpush1.msra.mxu0 0.0
    %1848 = vmatprep.subr.mxu0 0.0
    %1849 = vmatpush1.msra.mxu0 0.0
    %1850 = vmatprep.subr.mxu0 0.0
    %1851 = vmatpush1.msra.mxu0 0.0
    %1852 = vmatprep.subr.mxu0 0.0
    %1853 = vmatpush1.msra.mxu0 0.0
    %1854 = vmatprep.subr.mxu0 0.0
    %1855 = vmatpush1.msra.mxu0 0.0
    %1856 = vmatprep.subr.mxu0 0.0
    %1857 = vmatpush1.msra.mxu0 0.0
    %1858 = vmatprep.subr.mxu0 0.0
    %1859 = vmatpush1.msra.mxu0 0.0
    %1860 = vmatprep.subr.mxu0 0.0
    %1861 = vmatpush1.msra.mxu0 0.0
    %1862 = vmatprep.subr.mxu0 0.0
    %1863 = vmatpush1.msra.mxu0 0.0
    %1864 = vmatprep.subr.mxu0 0.0
    %1865 = vmatpush1.msra.mxu0 0.0
    %1866 = vmatprep.mubr.f32.mxu0 0.0
    %1867 = vmatmul.mubr.f32.gmra.mrb[0].mxu0 %v126
    %v1868 = vpop.f32.mrb[0].mxu0
    %v1869 = vadd.f32 %v1798, %v1868
    %v1870 = vpop.f32.mrb[0].mxu0
    %v1871 = vadd.f32 %v1800, %v1870
    %1872 = vdwg.mxu0
    %1873 = vmatprep.subr.mxu0 %v1270
    %1874 = vmatpush1.msra.mxu0 %v1269
    %1875 = vmatprep.subr.mxu0 %v1274
    %1876 = vmatpush1.msra.mxu0 %v1273
    %1877 = vmatprep.subr.mxu0 %v1278
    %1878 = vmatpush1.msra.mxu0 %v1277
    %1879 = vmatprep.subr.mxu0 %v1282
    %1880 = vmatpush1.msra.mxu0 %v1281
    %1881 = vmatprep.subr.mxu0 %v1286
    %1882 = vmatpush1.msra.mxu0 %v1285
    %1883 = vmatprep.subr.mxu0 %v1290
    %1884 = vmatpush1.msra.mxu0 %v1289
    %1885 = vmatprep.subr.mxu0 %v1294
    %1886 = vmatpush1.msra.mxu0 %v1293
    %1887 = vmatprep.subr.mxu0 %v1298
    %1888 = vmatpush1.msra.mxu0 %v1297
    %1889 = vmatprep.subr.mxu0 %v1302
    %1890 = vmatpush1.msra.mxu0 %v1301
    %1891 = vmatprep.subr.mxu0 %v1306
    %1892 = vmatpush1.msra.mxu0 %v1305
    %1893 = vmatprep.subr.mxu0 %v1310
    %1894 = vmatpush1.msra.mxu0 %v1309
    %1895 = vmatprep.subr.mxu0 %v1314
    %1896 = vmatpush1.msra.mxu0 %v1313
    %1897 = vmatprep.subr.mxu0 %v1318
    %1898 = vmatpush1.msra.mxu0 %v1317
    %1899 = vmatprep.subr.mxu0 %v1322
    %1900 = vmatpush1.msra.mxu0 %v1321
    %1901 = vmatprep.subr.mxu0 %v1326
    %1902 = vmatpush1.msra.mxu0 %v1325
    %1903 = vmatprep.subr.mxu0 %v1330
    %1904 = vmatpush1.msra.mxu0 %v1329
    %1905 = vmatprep.subr.mxu0 %v1334
    %1906 = vmatpush1.msra.mxu0 %v1333
    %1907 = vmatprep.subr.mxu0 %v1338
    %1908 = vmatpush1.msra.mxu0 %v1337
    %1909 = vmatprep.subr.mxu0 %v1342
    %1910 = vmatpush1.msra.mxu0 %v1341
    %1911 = vmatprep.subr.mxu0 %v1346
    %1912 = vmatpush1.msra.mxu0 %v1345
    %1913 = vmatprep.subr.mxu0 %v1350
    %1914 = vmatpush1.msra.mxu0 %v1349
    %1915 = vmatprep.subr.mxu0 %v1354
    %1916 = vmatpush1.msra.mxu0 %v1353
    %1917 = vmatprep.subr.mxu0 %v1358
    %1918 = vmatpush1.msra.mxu0 %v1357
    %1919 = vmatprep.subr.mxu0 %v1362
    %1920 = vmatpush1.msra.mxu0 %v1361
    %1921 = vmatprep.subr.mxu0 %v1366
    %1922 = vmatpush1.msra.mxu0 %v1365
    %1923 = vmatprep.subr.mxu0 %v1370
    %1924 = vmatpush1.msra.mxu0 %v1369
    %1925 = vmatprep.subr.mxu0 %v1374
    %1926 = vmatpush1.msra.mxu0 %v1373
    %1927 = vmatprep.subr.mxu0 %v1378
    %1928 = vmatpush1.msra.mxu0 %v1377
    %1929 = vmatprep.subr.mxu0 %v1382
    %1930 = vmatpush1.msra.mxu0 %v1381
    %1931 = vmatprep.subr.mxu0 %v1386
    %1932 = vmatpush1.msra.mxu0 %v1385
    %1933 = vmatprep.subr.mxu0 %v1390
    %1934 = vmatpush1.msra.mxu0 %v1389
    %1935 = vmatprep.subr.mxu0 %v1394
    %1936 = vmatpush1.msra.mxu0 %v1393
    %1937 = vmatprep.mubr.f32.mxu0 %v1267
    %1938 = vmatmul.mubr.f32.gmra.mrb[0].mxu0 %v1265
    %v1939 = vpop.f32.mrb[0].mxu0
    %v1940 = vadd.f32 %v1727, %v1939
    %v1941 = vpop.f32.mrb[0].mxu0
    %v1942 = vadd.f32 %v1729, %v1941
    %1943 = vdwg.mxu0
    %1944 = vmatprep.subr.mxu0 %v1272
    %1945 = vmatpush1.msra.mxu0 %v1271
    %1946 = vmatprep.subr.mxu0 %v1276
    %1947 = vmatpush1.msra.mxu0 %v1275
    %1948 = vmatprep.subr.mxu0 %v1280
    %1949 = vmatpush1.msra.mxu0 %v1279
    %1950 = vmatprep.subr.mxu0 %v1284
    %1951 = vmatpush1.msra.mxu0 %v1283
    %1952 = vmatprep.subr.mxu0 %v1288
    %1953 = vmatpush1.msra.mxu0 %v1287
    %1954 = vmatprep.subr.mxu0 %v1292
    %1955 = vmatpush1.msra.mxu0 %v1291
    %1956 = vmatprep.subr.mxu0 %v1296
    %1957 = vmatpush1.msra.mxu0 %v1295
    %1958 = vmatprep.subr.mxu0 %v1300
    %1959 = vmatpush1.msra.mxu0 %v1299
    %1960 = vmatprep.subr.mxu0 %v1304
    %1961 = vmatpush1.msra.mxu0 %v1303
    %1962 = vmatprep.subr.mxu0 %v1308
    %1963 = vmatpush1.msra.mxu0 %v1307
    %1964 = vmatprep.subr.mxu0 %v1312
    %1965 = vmatpush1.msra.mxu0 %v1311
    %1966 = vmatprep.subr.mxu0 %v1316
    %1967 = vmatpush1.msra.mxu0 %v1315
    %1968 = vmatprep.subr.mxu0 %v1320
    %1969 = vmatpush1.msra.mxu0 %v1319
    %1970 = vmatprep.subr.mxu0 %v1324
    %1971 = vmatpush1.msra.mxu0 %v1323
    %1972 = vmatprep.subr.mxu0 %v1328
    %1973 = vmatpush1.msra.mxu0 %v1327
    %1974 = vmatprep.subr.mxu0 %v1332
    %1975 = vmatpush1.msra.mxu0 %v1331
    %1976 = vmatprep.subr.mxu0 %v1336
    %1977 = vmatpush1.msra.mxu0 %v1335
    %1978 = vmatprep.subr.mxu0 %v1340
    %1979 = vmatpush1.msra.mxu0 %v1339
    %1980 = vmatprep.subr.mxu0 %v1344
    %1981 = vmatpush1.msra.mxu0 %v1343
    %1982 = vmatprep.subr.mxu0 %v1348
    %1983 = vmatpush1.msra.mxu0 %v1347
    %1984 = vmatprep.subr.mxu0 %v1352
    %1985 = vmatpush1.msra.mxu0 %v1351
    %1986 = vmatprep.subr.mxu0 %v1356
    %1987 = vmatpush1.msra.mxu0 %v1355
    %1988 = vmatprep.subr.mxu0 %v1360
    %1989 = vmatpush1.msra.mxu0 %v1359
    %1990 = vmatprep.subr.mxu0 %v1364
    %1991 = vmatpush1.msra.mxu0 %v1363
    %1992 = vmatprep.subr.mxu0 %v1368
    %1993 = vmatpush1.msra.mxu0 %v1367
    %1994 = vmatprep.subr.mxu0 %v1372
    %1995 = vmatpush1.msra.mxu0 %v1371
    %1996 = vmatprep.subr.mxu0 %v1376
    %1997 = vmatpush1.msra.mxu0 %v1375
    %1998 = vmatprep.subr.mxu0 %v1380
    %1999 = vmatpush1.msra.mxu0 %v1379
    %2000 = vmatprep.subr.mxu0 %v1384
    %2001 = vmatpush1.msra.mxu0 %v1383
    %2002 = vmatprep.subr.mxu0 %v1388
    %2003 = vmatpush1.msra.mxu0 %v1387
    %2004 = vmatprep.subr.mxu0 %v1392
    %2005 = vmatpush1.msra.mxu0 %v1391
    %2006 = vmatprep.subr.mxu0 %v1396
    %2007 = vmatpush1.msra.mxu0 %v1395
    %2008 = vmatprep.mubr.f32.mxu0 %v1267
    %2009 = vmatmul.mubr.f32.gmra.mrb[0].mxu0 %v1265
    %v2010 = vpop.f32.mrb[0].mxu0
    %v2011 = vadd.f32 %v1869, %v2010
    %v2012 = vpop.f32.mrb[0].mxu0
    %v2013 = vadd.f32 %v1871, %v2012
    %2014 = vdwg.mxu0
    %v2015 = vld [vmem:[%s9] sm:$0xf]
    %v2017 = vlaneseq
    %v2018 = vshrl.u32 %v2017, 7
    %v2019 = vsub.s32 0, %v2018
    %v2020 = vrot.slane %v2015, %v2019
    %v2021 = vlaneseq
    %v2022 = vshrl.u32 %v2021, 7
    %v2023 = vsub.s32 1, %v2022
    %v2024 = vrot.slane %v2015, %v2023
    %v2025 = vlaneseq
    %v2026 = vshrl.u32 %v2025, 7
    %v2027 = vsub.s32 2, %v2026
    %v2028 = vrot.slane %v2015, %v2027
    %v2029 = vlaneseq
    %v2030 = vshrl.u32 %v2029, 7
    %v2031 = vsub.s32 3, %v2030
    %v2032 = vrot.slane %v2015, %v2031
    %v2037 = vadd.f32 %v1940, %v2020
    %v2038 = vadd.f32 %v1942, %v2024
    %v2039 = vadd.f32 %v2011, %v2028
    %v2040 = vadd.f32 %v2013, %v2032
    %v2041 = vmax.f32 %v2037, 0.0
    %v2042 = vmax.f32 %v2038, 0.0
    %v2043 = vmax.f32 %v2039, 0.0
    %v2044 = vmax.f32 %v2040, 0.0
    %v2045 = vld [vmem:[#allocation11] sm:$0xff]
    %v2046 = vld [vmem:[#allocation11 + $0x8] sm:$0xff]
    %v2047 = vld [vmem:[#allocation11 + $0x10] sm:$0xff]
    %v2048 = vld [vmem:[#allocation11 + $0x18] sm:$0xff]
    %v2049 = vld [vmem:[#allocation11 + $0x20] sm:$0xff]
    %v2050 = vld [vmem:[#allocation11 + $0x28] sm:$0xff]
    %v2051 = vld [vmem:[#allocation11 + $0x30] sm:$0xff]
    %v2052 = vld [vmem:[#allocation11 + $0x38] sm:$0xff]
    %v2053 = vld [vmem:[#allocation11 + $0x40] sm:$0xff]
    %v2054 = vld [vmem:[#allocation11 + $0x48] sm:$0xff]
    %v2055 = vld [vmem:[#allocation11 + $0x50] sm:$0xff]
    %v2056 = vld [vmem:[#allocation11 + $0x58] sm:$0xff]
    %v2057 = vld [vmem:[#allocation11 + $0x60] sm:$0xff]
    %v2058 = vld [vmem:[#allocation11 + $0x68] sm:$0xff]
    %v2059 = vld [vmem:[#allocation11 + $0x70] sm:$0xff]
    %v2060 = vld [vmem:[#allocation11 + $0x78] sm:$0xff]
    %v2061 = vld [vmem:[#allocation11 + $0x80] sm:$0xff]
    %v2062 = vld [vmem:[#allocation11 + $0x88] sm:$0xff]
    %v2063 = vld [vmem:[#allocation11 + $0x90] sm:$0xff]
    %v2064 = vld [vmem:[#allocation11 + $0x98] sm:$0xff]
    %v2065 = vld [vmem:[#allocation11 + $0xa0] sm:$0xff]
    %v2066 = vld [vmem:[#allocation11 + $0xa8] sm:$0xff]
    %v2067 = vld [vmem:[#allocation11 + $0xb0] sm:$0xff]
    %v2068 = vld [vmem:[#allocation11 + $0xb8] sm:$0xff]
    %v2069 = vld [vmem:[#allocation11 + $0xc0] sm:$0xff]
    %v2070 = vld [vmem:[#allocation11 + $0xc8] sm:$0xff]
    %v2071 = vld [vmem:[#allocation11 + $0xd0] sm:$0xff]
    %v2072 = vld [vmem:[#allocation11 + $0xd8] sm:$0xff]
    %v2073 = vld [vmem:[#allocation11 + $0xe0] sm:$0xff]
    %v2074 = vld [vmem:[#allocation11 + $0xe8] sm:$0xff]
    %v2075 = vld [vmem:[#allocation11 + $0xf0] sm:$0xff]
    %v2076 = vld [vmem:[#allocation11 + $0xf8] sm:$0xff]
    %v2077 = vld [vmem:[#allocation11 + $0x100] sm:$0xff]
    %v2078 = vld [vmem:[#allocation11 + $0x108] sm:$0xff]
    %v2079 = vld [vmem:[#allocation11 + $0x110] sm:$0xff]
    %v2080 = vld [vmem:[#allocation11 + $0x118] sm:$0xff]
    %v2081 = vld [vmem:[#allocation11 + $0x120] sm:$0xff]
    %v2082 = vld [vmem:[#allocation11 + $0x128] sm:$0xff]
    %v2083 = vld [vmem:[#allocation11 + $0x130] sm:$0xff]
    %v2084 = vld [vmem:[#allocation11 + $0x138] sm:$0xff]
    %v2085 = vld [vmem:[#allocation11 + $0x140] sm:$0xff]
    %v2086 = vld [vmem:[#allocation11 + $0x148] sm:$0xff]
    %v2087 = vld [vmem:[#allocation11 + $0x150] sm:$0xff]
    %v2088 = vld [vmem:[#allocation11 + $0x158] sm:$0xff]
    %v2089 = vld [vmem:[#allocation11 + $0x160] sm:$0xff]
    %v2090 = vld [vmem:[#allocation11 + $0x168] sm:$0xff]
    %v2091 = vld [vmem:[#allocation11 + $0x170] sm:$0xff]
    %v2092 = vld [vmem:[#allocation11 + $0x178] sm:$0xff]
    %v2093 = vld [vmem:[#allocation11 + $0x180] sm:$0xff]
    %v2094 = vld [vmem:[#allocation11 + $0x188] sm:$0xff]
    %v2095 = vld [vmem:[#allocation11 + $0x190] sm:$0xff]
    %v2096 = vld [vmem:[#allocation11 + $0x198] sm:$0xff]
    %v2097 = vld [vmem:[#allocation11 + $0x1a0] sm:$0xff]
    %v2098 = vld [vmem:[#allocation11 + $0x1a8] sm:$0xff]
    %v2099 = vld [vmem:[#allocation11 + $0x1b0] sm:$0xff]
    %v2100 = vld [vmem:[#allocation11 + $0x1b8] sm:$0xff]
    %v2101 = vld [vmem:[#allocation11 + $0x1c0] sm:$0xff]
    %v2102 = vld [vmem:[#allocation11 + $0x1c8] sm:$0xff]
    %v2103 = vld [vmem:[#allocation11 + $0x1d0] sm:$0xff]
    %v2104 = vld [vmem:[#allocation11 + $0x1d8] sm:$0xff]
    %v2105 = vld [vmem:[#allocation11 + $0x1e0] sm:$0xff]
    %v2106 = vld [vmem:[#allocation11 + $0x1e8] sm:$0xff]
    %v2107 = vld [vmem:[#allocation11 + $0x1f0] sm:$0xff]
    %v2108 = vld [vmem:[#allocation11 + $0x1f8] sm:$0xff]
    %v2109 = vld [vmem:[#allocation11 + $0x200] sm:$0xff]
    %v2110 = vld [vmem:[#allocation11 + $0x208] sm:$0xff]
    %v2111 = vld [vmem:[#allocation11 + $0x210] sm:$0xff]
    %v2112 = vld [vmem:[#allocation11 + $0x218] sm:$0xff]
    %v2113 = vld [vmem:[#allocation11 + $0x220] sm:$0xff]
    %v2114 = vld [vmem:[#allocation11 + $0x228] sm:$0xff]
    %v2115 = vld [vmem:[#allocation11 + $0x230] sm:$0xff]
    %v2116 = vld [vmem:[#allocation11 + $0x238] sm:$0xff]
    %v2117 = vld [vmem:[#allocation11 + $0x240] sm:$0xff]
    %v2118 = vld [vmem:[#allocation11 + $0x248] sm:$0xff]
    %v2119 = vld [vmem:[#allocation11 + $0x250] sm:$0xff]
    %v2120 = vld [vmem:[#allocation11 + $0x258] sm:$0xff]
    %v2121 = vld [vmem:[#allocation11 + $0x260] sm:$0xff]
    %v2122 = vld [vmem:[#allocation11 + $0x268] sm:$0xff]
    %v2123 = vld [vmem:[#allocation11 + $0x270] sm:$0xff]
    %v2124 = vld [vmem:[#allocation11 + $0x278] sm:$0xff]
    %v2125 = vld [vmem:[#allocation11 + $0x280] sm:$0xff]
    %v2126 = vld [vmem:[#allocation11 + $0x288] sm:$0xff]
    %v2127 = vld [vmem:[#allocation11 + $0x290] sm:$0xff]
    %v2128 = vld [vmem:[#allocation11 + $0x298] sm:$0xff]
    %v2129 = vld [vmem:[#allocation11 + $0x2a0] sm:$0xff]
    %v2130 = vld [vmem:[#allocation11 + $0x2a8] sm:$0xff]
    %v2131 = vld [vmem:[#allocation11 + $0x2b0] sm:$0xff]
    %v2132 = vld [vmem:[#allocation11 + $0x2b8] sm:$0xff]
    %v2133 = vld [vmem:[#allocation11 + $0x2c0] sm:$0xff]
    %v2134 = vld [vmem:[#allocation11 + $0x2c8] sm:$0xff]
    %v2135 = vld [vmem:[#allocation11 + $0x2d0] sm:$0xff]
    %v2136 = vld [vmem:[#allocation11 + $0x2d8] sm:$0xff]
    %v2137 = vld [vmem:[#allocation11 + $0x2e0] sm:$0xff]
    %v2138 = vld [vmem:[#allocation11 + $0x2e8] sm:$0xff]
    %v2139 = vld [vmem:[#allocation11 + $0x2f0] sm:$0xff]
    %v2140 = vld [vmem:[#allocation11 + $0x2f8] sm:$0xff]
    %v2141 = vld [vmem:[#allocation11 + $0x300] sm:$0xff]
    %v2142 = vld [vmem:[#allocation11 + $0x308] sm:$0xff]
    %v2143 = vld [vmem:[#allocation11 + $0x310] sm:$0xff]
    %v2144 = vld [vmem:[#allocation11 + $0x318] sm:$0xff]
    %v2145 = vld [vmem:[#allocation11 + $0x320] sm:$0xff]
    %v2146 = vld [vmem:[#allocation11 + $0x328] sm:$0xff]
    %v2147 = vld [vmem:[#allocation11 + $0x330] sm:$0xff]
    %v2148 = vld [vmem:[#allocation11 + $0x338] sm:$0xff]
    %v2149 = vld [vmem:[#allocation11 + $0x340] sm:$0xff]
    %v2150 = vld [vmem:[#allocation11 + $0x348] sm:$0xff]
    %v2151 = vld [vmem:[#allocation11 + $0x350] sm:$0xff]
    %v2152 = vld [vmem:[#allocation11 + $0x358] sm:$0xff]
    %v2153 = vld [vmem:[#allocation11 + $0x360] sm:$0xff]
    %v2154 = vld [vmem:[#allocation11 + $0x368] sm:$0xff]
    %v2155 = vld [vmem:[#allocation11 + $0x370] sm:$0xff]
    %v2156 = vld [vmem:[#allocation11 + $0x378] sm:$0xff]
    %v2157 = vld [vmem:[#allocation11 + $0x380] sm:$0xff]
    %v2158 = vld [vmem:[#allocation11 + $0x388] sm:$0xff]
    %v2159 = vld [vmem:[#allocation11 + $0x390] sm:$0xff]
    %v2160 = vld [vmem:[#allocation11 + $0x398] sm:$0xff]
    %v2161 = vld [vmem:[#allocation11 + $0x3a0] sm:$0xff]
    %v2162 = vld [vmem:[#allocation11 + $0x3a8] sm:$0xff]
    %v2163 = vld [vmem:[#allocation11 + $0x3b0] sm:$0xff]
    %v2164 = vld [vmem:[#allocation11 + $0x3b8] sm:$0xff]
    %v2165 = vld [vmem:[#allocation11 + $0x3c0] sm:$0xff]
    %v2166 = vld [vmem:[#allocation11 + $0x3c8] sm:$0xff]
    %v2167 = vld [vmem:[#allocation11 + $0x3d0] sm:$0xff]
    %v2168 = vld [vmem:[#allocation11 + $0x3d8] sm:$0xff]
    %v2169 = vld [vmem:[#allocation11 + $0x3e0] sm:$0xff]
    %v2170 = vld [vmem:[#allocation11 + $0x3e8] sm:$0xff]
    %v2171 = vld [vmem:[#allocation11 + $0x3f0] sm:$0xff]
    %v2172 = vld [vmem:[#allocation11 + $0x3f8] sm:$0xff]
    %v2173 = vld [vmem:[%s11] sm:$0x3]
    %v2175 = vlaneseq
    %v2176 = vshrl.u32 %v2175, 7
    %v2177 = vsub.s32 0, %v2176
    %v2178 = vrot.slane %v2173, %v2177
    %v2179 = vlaneseq
    %v2180 = vshrl.u32 %v2179, 7
    %v2181 = vsub.s32 1, %v2180
    %v2182 = vrot.slane %v2173, %v2181
    %2185 = vmatprep.subr.mxu0 %v2046
    %2186 = vmatpush1.msra.mxu0 %v2045
    %2187 = vmatprep.subr.mxu0 %v2048
    %2188 = vmatpush1.msra.mxu0 %v2047
    %2189 = vmatprep.subr.mxu0 %v2050
    %2190 = vmatpush1.msra.mxu0 %v2049
    %2191 = vmatprep.subr.mxu0 %v2052
    %2192 = vmatpush1.msra.mxu0 %v2051
    %2193 = vmatprep.subr.mxu0 %v2054
    %2194 = vmatpush1.msra.mxu0 %v2053
    %2195 = vmatprep.subr.mxu0 %v2056
    %2196 = vmatpush1.msra.mxu0 %v2055
    %2197 = vmatprep.subr.mxu0 %v2058
    %2198 = vmatpush1.msra.mxu0 %v2057
    %2199 = vmatprep.subr.mxu0 %v2060
    %2200 = vmatpush1.msra.mxu0 %v2059
    %2201 = vmatprep.subr.mxu0 %v2062
    %2202 = vmatpush1.msra.mxu0 %v2061
    %2203 = vmatprep.subr.mxu0 %v2064
    %2204 = vmatpush1.msra.mxu0 %v2063
    %2205 = vmatprep.subr.mxu0 %v2066
    %2206 = vmatpush1.msra.mxu0 %v2065
    %2207 = vmatprep.subr.mxu0 %v2068
    %2208 = vmatpush1.msra.mxu0 %v2067
    %2209 = vmatprep.subr.mxu0 %v2070
    %2210 = vmatpush1.msra.mxu0 %v2069
    %2211 = vmatprep.subr.mxu0 %v2072
    %2212 = vmatpush1.msra.mxu0 %v2071
    %2213 = vmatprep.subr.mxu0 %v2074
    %2214 = vmatpush1.msra.mxu0 %v2073
    %2215 = vmatprep.subr.mxu0 %v2076
    %2216 = vmatpush1.msra.mxu0 %v2075
    %2217 = vmatprep.subr.mxu0 %v2078
    %2218 = vmatpush1.msra.mxu0 %v2077
    %2219 = vmatprep.subr.mxu0 %v2080
    %2220 = vmatpush1.msra.mxu0 %v2079
    %2221 = vmatprep.subr.mxu0 %v2082
    %2222 = vmatpush1.msra.mxu0 %v2081
    %2223 = vmatprep.subr.mxu0 %v2084
    %2224 = vmatpush1.msra.mxu0 %v2083
    %2225 = vmatprep.subr.mxu0 %v2086
    %2226 = vmatpush1.msra.mxu0 %v2085
    %2227 = vmatprep.subr.mxu0 %v2088
    %2228 = vmatpush1.msra.mxu0 %v2087
    %2229 = vmatprep.subr.mxu0 %v2090
    %2230 = vmatpush1.msra.mxu0 %v2089
    %2231 = vmatprep.subr.mxu0 %v2092
    %2232 = vmatpush1.msra.mxu0 %v2091
    %2233 = vmatprep.subr.mxu0 %v2094
    %2234 = vmatpush1.msra.mxu0 %v2093
    %2235 = vmatprep.subr.mxu0 %v2096
    %2236 = vmatpush1.msra.mxu0 %v2095
    %2237 = vmatprep.subr.mxu0 %v2098
    %2238 = vmatpush1.msra.mxu0 %v2097
    %2239 = vmatprep.subr.mxu0 %v2100
    %2240 = vmatpush1.msra.mxu0 %v2099
    %2241 = vmatprep.subr.mxu0 %v2102
    %2242 = vmatpush1.msra.mxu0 %v2101
    %2243 = vmatprep.subr.mxu0 %v2104
    %2244 = vmatpush1.msra.mxu0 %v2103
    %2245 = vmatprep.subr.mxu0 %v2106
    %2246 = vmatpush1.msra.mxu0 %v2105
    %2247 = vmatprep.subr.mxu0 %v2108
    %2248 = vmatpush1.msra.mxu0 %v2107
    %2249 = vmatprep.mubr.f32.mxu0 %v2042
    %2250 = vmatmul.mubr.f32.gmra.mrb[0].mxu0 %v2041
    %v2251 = vpop.f32.mrb[0].mxu0
    %v2252 = vadd.f32 %v2178, %v2251
    %v2253 = vpop.f32.mrb[0].mxu0
    %v2254 = vadd.f32 %v2182, %v2253
    %2255 = vdwg.mxu0
    %2256 = vmatprep.subr.mxu0 %v2110
    %2257 = vmatpush1.msra.mxu0 %v2109
    %2258 = vmatprep.subr.mxu0 %v2112
    %2259 = vmatpush1.msra.mxu0 %v2111
    %2260 = vmatprep.subr.mxu0 %v2114
    %2261 = vmatpush1.msra.mxu0 %v2113
    %2262 = vmatprep.subr.mxu0 %v2116
    %2263 = vmatpush1.msra.mxu0 %v2115
    %2264 = vmatprep.subr.mxu0 %v2118
    %2265 = vmatpush1.msra.mxu0 %v2117
    %2266 = vmatprep.subr.mxu0 %v2120
    %2267 = vmatpush1.msra.mxu0 %v2119
    %2268 = vmatprep.subr.mxu0 %v2122
    %2269 = vmatpush1.msra.mxu0 %v2121
    %2270 = vmatprep.subr.mxu0 %v2124
    %2271 = vmatpush1.msra.mxu0 %v2123
    %2272 = vmatprep.subr.mxu0 %v2126
    %2273 = vmatpush1.msra.mxu0 %v2125
    %2274 = vmatprep.subr.mxu0 %v2128
    %2275 = vmatpush1.msra.mxu0 %v2127
    %2276 = vmatprep.subr.mxu0 %v2130
    %2277 = vmatpush1.msra.mxu0 %v2129
    %2278 = vmatprep.subr.mxu0 %v2132
    %2279 = vmatpush1.msra.mxu0 %v2131
    %2280 = vmatprep.subr.mxu0 %v2134
    %2281 = vmatpush1.msra.mxu0 %v2133
    %2282 = vmatprep.subr.mxu0 %v2136
    %2283 = vmatpush1.msra.mxu0 %v2135
    %2284 = vmatprep.subr.mxu0 %v2138
    %2285 = vmatpush1.msra.mxu0 %v2137
    %2286 = vmatprep.subr.mxu0 %v2140
    %2287 = vmatpush1.msra.mxu0 %v2139
    %2288 = vmatprep.subr.mxu0 %v2142
    %2289 = vmatpush1.msra.mxu0 %v2141
    %2290 = vmatprep.subr.mxu0 %v2144
    %2291 = vmatpush1.msra.mxu0 %v2143
    %2292 = vmatprep.subr.mxu0 %v2146
    %2293 = vmatpush1.msra.mxu0 %v2145
    %2294 = vmatprep.subr.mxu0 %v2148
    %2295 = vmatpush1.msra.mxu0 %v2147
    %2296 = vmatprep.subr.mxu0 %v2150
    %2297 = vmatpush1.msra.mxu0 %v2149
    %2298 = vmatprep.subr.mxu0 %v2152
    %2299 = vmatpush1.msra.mxu0 %v2151
    %2300 = vmatprep.subr.mxu0 %v2154
    %2301 = vmatpush1.msra.mxu0 %v2153
    %2302 = vmatprep.subr.mxu0 %v2156
    %2303 = vmatpush1.msra.mxu0 %v2155
    %2304 = vmatprep.subr.mxu0 %v2158
    %2305 = vmatpush1.msra.mxu0 %v2157
    %2306 = vmatprep.subr.mxu0 %v2160
    %2307 = vmatpush1.msra.mxu0 %v2159
    %2308 = vmatprep.subr.mxu0 %v2162
    %2309 = vmatpush1.msra.mxu0 %v2161
    %2310 = vmatprep.subr.mxu0 %v2164
    %2311 = vmatpush1.msra.mxu0 %v2163
    %2312 = vmatprep.subr.mxu0 %v2166
    %2313 = vmatpush1.msra.mxu0 %v2165
    %2314 = vmatprep.subr.mxu0 %v2168
    %2315 = vmatpush1.msra.mxu0 %v2167
    %2316 = vmatprep.subr.mxu0 %v2170
    %2317 = vmatpush1.msra.mxu0 %v2169
    %2318 = vmatprep.subr.mxu0 %v2172
    %2319 = vmatpush1.msra.mxu0 %v2171
    %2320 = vmatprep.mubr.f32.mxu0 %v2044
    %2321 = vmatmul.mubr.f32.gmra.mrb[0].mxu0 %v2043
    %v2322 = vpop.f32.mrb[0].mxu0
    %v2323 = vadd.f32 %v2252, %v2322
    %v2324 = vpop.f32.mrb[0].mxu0
    %v2325 = vadd.f32 %v2254, %v2324
    %2326 = vdwg.mxu0
    %2327 = vst [vmem:[#allocation13] sm:$0xff] %v2323
    %2328 = vst [vmem:[#allocation13 + $0x8] sm:$0xff] %v2325
    // Predicated region
    $region74: #{simple_net_forward.1} parent=1 // pred_check
      _
    $region75: #{simple_net_forward.1} parent=1 // pred_check_branch
      %2330 = sbr.rel (0) target = $region77
    $region76: #{simple_net_forward.1} parent=1 // pred_region
      %s2332 = ssub.s32 256, 256
      %2333 = vsyncadd [#allocation4], %s2332
      %s2335 = sshll.u32 [#allocation13], 4
      %s2336 = int_to_ptr.vmem [resolvable:$true] %s2335
      %2338 = dma.vmem_to_hbm [thread:$0]  %s2336, 256, %s12, [#allocation4]
    $region77: #{simple_net_forward.1} parent=1 // pred_fallthru
      _
    // Predicated region
    $region78: #{simple_net_forward.1} parent=1 // pred_check
      _
    $region79: #{simple_net_forward.1} parent=1 // pred_check_branch
      %2340 = sbr.rel (0) target = $region81
    $region80: #{simple_net_forward.1} parent=1 // pred_region
      %2341 = dma.done [#allocation4], 256
    $region81: #{simple_net_forward.1} parent=1 // pred_fallthru
      _
    %2342 = vsyncpa [#allocation3], 1
    %2343 = vsyncpa [#allocation6], 1
    %2344 = vsyncpa [#allocation9], 1
    %2345 = vsyncpa [#allocation12], 1
    %2346 = vsyncpa [#allocation4], 1

</llo_original>
